<compile_context>
chip_gen: v7x
topology: tpu7x:2x2x1
jax: 0.10.0
libtpu: 0.0.40
codegen_flags: <defaults>
</compile_context>

<pallas_src>
import jax
import jax.numpy as jnp
from jax.experimental import pallas as pl
from jax.experimental.pallas import tpu as pltpu


def _round_up(n, m):
    return ((n + m - 1) // m) * m


def autoencoder_kernel(x_ref, w1_ref, b1_ref, w2_ref, b2_ref, o_ref):
    # Encoder: h = tanh(x @ W1 + b1)
    # bf16 operands feed the MXU; accumulation is f32; bias/tanh in f32.
    h = jnp.tanh(
        jnp.dot(x_ref[...], w1_ref[...], preferred_element_type=jnp.float32)
        + b1_ref[...]
    )
    # Decoder: y = sigmoid(h @ W2 + b2)
    # Feed the MXU with bf16 'h' (f32 accumulation); bias/sigmoid in f32.
    y = jax.nn.sigmoid(
        jnp.dot(h.astype(w2_ref.dtype), w2_ref[...],
                preferred_element_type=jnp.float32)
        + b2_ref[...]
    )
    o_ref[...] = y.astype(o_ref.dtype)


def autoencoder_forward(x, w1, b1, w2, b2, *, tile_b=256):
    """x: (B, F); w1: (F, H); b1: (1, H) or (H,); w2: (H, F); b2: (1, F) or (F,).

    Returns sigmoid(tanh(x @ w1 + b1) @ w2 + b2) as float32 of shape (B, F).
    """
    B, F = x.shape
    F2, H = w1.shape
    assert F2 == F and w2.shape == (H, F)

    # Lane-dense padding for the feature / hidden dims.
    F_pad = _round_up(F, 128)
    H_pad = _round_up(H, 128)

    # Batch tile: as large as requested, but never larger than the (sublane-
    # rounded) batch itself; pad the batch to a multiple of the tile.
    tb = _round_up(min(tile_b, _round_up(B, 8)), 8)
    B_pad = _round_up(B, tb)

    # bf16 for the streamed x and resident weights (halves HBM bytes, doubles
    # MXU rate); biases stay f32 since the elementwise path is f32.
    bf16, f32 = jnp.bfloat16, jnp.float32
    xp = jnp.zeros((B_pad, F_pad), bf16).at[:B, :F].set(x.astype(bf16))
    w1p = jnp.zeros((F_pad, H_pad), bf16).at[:F, :H].set(w1.astype(bf16))
    b1p = jnp.zeros((1, H_pad), f32).at[:, :H].set(b1.reshape(1, H).astype(f32))
    w2p = jnp.zeros((H_pad, F_pad), bf16).at[:H, :F].set(w2.astype(bf16))
    b2p = jnp.zeros((1, F_pad), f32).at[:, :F].set(b2.reshape(1, F).astype(f32))

    grid = (B_pad // tb,)

    # Explicit VMEM budget so the larger tiles compile at the intended
    # pipeline depth (default scoped limit is 16/32 MiB depending on chip).
    vmem_need = (
        2 * tb * F_pad * 2          # x tile (bf16), double-buffered
        + 2 * tb * F_pad * 4        # output tile (f32), double-buffered
        + 2 * F_pad * H_pad * 2     # W1 (bf16) buffers
        + 2 * H_pad * F_pad * 2     # W2 (bf16) buffers
        + 2 * 8 * (H_pad + F_pad) * 4  # biases (padded sublanes)
        + 4 * tb * H_pad * 4        # headroom for h / intermediates
    )
    vmem_limit = int(min(max(32 * 1024 * 1024, 2 * vmem_need),
                         96 * 1024 * 1024))

    out = pl.pallas_call(
        autoencoder_kernel,
        out_shape=jax.ShapeDtypeStruct((B_pad, F_pad), jnp.float32),
        grid_spec=pltpu.PrefetchScalarGridSpec(
            num_scalar_prefetch=0,
            grid=grid,
            in_specs=[
                pl.BlockSpec((tb, F_pad), lambda i: (i, 0)),     # x tile
                pl.BlockSpec((F_pad, H_pad), lambda i: (0, 0)),  # W1 (resident)
                pl.BlockSpec((1, H_pad), lambda i: (0, 0)),      # b1
                pl.BlockSpec((H_pad, F_pad), lambda i: (0, 0)),  # W2 (resident)
                pl.BlockSpec((1, F_pad), lambda i: (0, 0)),      # b2
            ],
            out_specs=pl.BlockSpec((tb, F_pad), lambda i: (i, 0)),
        ),
        compiler_params=pltpu.CompilerParams(
            dimension_semantics=("parallel",),
            vmem_limit_bytes=vmem_limit,
        ),
    )(xp, w1p, b1p, w2p, b2p)

    return out[:B, :F]


def init_params(key, feature_size, hidden=128):
    """Deterministic init mimicking PyTorch nn.Linear default (uniform +/- 1/sqrt(fan_in))."""
    k1, k2, k3, k4 = jax.random.split(key, 4)
    bound1 = 1.0 / jnp.sqrt(feature_size)
    bound2 = 1.0 / jnp.sqrt(hidden)
    # stored as (in, out) so the kernel does x @ W
    w1 = jax.random.uniform(k1, (feature_size, hidden), jnp.float32, -bound1, bound1)
    b1 = jax.random.uniform(k2, (1, hidden), jnp.float32, -bound1, bound1)
    w2 = jax.random.uniform(k3, (hidden, feature_size), jnp.float32, -bound2, bound2)
    b2 = jax.random.uniform(k4, (1, feature_size), jnp.float32, -bound2, bound2)
    return w1, b1, w2, b2


if __name__ == "__main__":
    key = jax.random.PRNGKey(0)
    kx, kp = jax.random.split(key)

    # Exercises both padding paths: batch not a multiple of the 256-row tile,
    # featureSize not a multiple of 128.
    batch = 384
    feature_size = 300  # stands in for dataset_train_object.featureSize
    hidden = 128

    # binary-ish EHR-style input, clipped to [0, 1] like Dataset.__getitem__
    x = jnp.clip(
        jax.random.uniform(kx, (batch, feature_size), jnp.float32, -0.2, 1.2),
        0.0, 1.0,
    )
    w1, b1, w2, b2 = init_params(kp, feature_size, hidden)

    out = autoencoder_forward(x, w1, b1, w2, b2)
    out = jax.block_until_ready(out)

    # Reference in plain JAX, mirroring the kernel's bf16-input / f32-accumulate
    # mixed precision so the comparison is apples-to-apples.
    xb = x.astype(jnp.bfloat16).astype(jnp.float32)
    w1b = w1.astype(jnp.bfloat16).astype(jnp.float32)
    w2b = w2.astype(jnp.bfloat16).astype(jnp.float32)
    h_ref = jnp.tanh(xb @ w1b + b1)
    h_ref = h_ref.astype(jnp.bfloat16).astype(jnp.float32)
    y_ref = jax.nn.sigmoid(h_ref @ w2b + b2)

    assert out.shape == (batch, feature_size)
    assert jnp.allclose(out, y_ref, atol=1e-2, rtol=1e-2), (
        float(jnp.max(jnp.abs(out - y_ref)))
    )

    print("KERNEL_OK")
</pallas_src>

<mosaic_0001>
module attributes {stable_mosaic.version = 11 : i64} {
  func.func @autoencoder_kernel(%arg0: i32, %arg1: memref<256x384xbf16, #tpu.memory_space<vmem>>, %arg2: memref<384x128xbf16, #tpu.memory_space<vmem>>, %arg3: memref<1x128xf32, #tpu.memory_space<vmem>>, %arg4: memref<128x384xbf16, #tpu.memory_space<vmem>>, %arg5: memref<1x384xf32, #tpu.memory_space<vmem>>, %arg6: memref<256x384xf32, #tpu.memory_space<vmem>>) attributes {dimension_semantics = [#tpu.dimension_semantics<parallel>], iteration_bounds = array<i64: 2>, scalar_prefetch = 0 : i64, scratch_operands = 0 : i64, tpu.core_type = #tpu.core_type<tc>, window_params = [{transform_indices = @transform_0, window_bounds = array<i64: 256, 384>}, {pipeline_mode = #tpu.pipeline_mode<synchronous>, transform_indices = @transform_1, window_bounds = array<i64: 384, 128>}, {pipeline_mode = #tpu.pipeline_mode<synchronous>, transform_indices = @transform_2, window_bounds = array<i64: 1, 128>}, {pipeline_mode = #tpu.pipeline_mode<synchronous>, transform_indices = @transform_3, window_bounds = array<i64: 128, 384>}, {pipeline_mode = #tpu.pipeline_mode<synchronous>, transform_indices = @transform_4, window_bounds = array<i64: 1, 384>}, {transform_indices = @transform_5, window_bounds = array<i64: 256, 384>}]} {
    %c0 = arith.constant 0 : index
    %c0_0 = arith.constant 0 : index
    %0 = vector.load %arg1[%c0, %c0_0] : memref<256x384xbf16, #tpu.memory_space<vmem>>, vector<256x384xbf16>
    %c0_1 = arith.constant 0 : index
    %c0_2 = arith.constant 0 : index
    %1 = vector.load %arg2[%c0_1, %c0_2] : memref<384x128xbf16, #tpu.memory_space<vmem>>, vector<384x128xbf16>
    %cst = arith.constant dense<0.000000e+00> : vector<256x128xf32>
    %2 = tpu.matmul %0, %1, %cst {dimension_numbers = #tpu.dot_dimension_numbers<[1], [0], [0], [1], [0, 0, 1, 1], [], []>} : vector<256x384xbf16>, vector<384x128xbf16>, vector<256x128xf32> -> vector<256x128xf32>
    %c0_3 = arith.constant 0 : index
    %c0_4 = arith.constant 0 : index
    %3 = vector.load %arg3[%c0_3, %c0_4] : memref<1x128xf32, #tpu.memory_space<vmem>>, vector<1x128xf32>
    %4 = vector.broadcast %3 : vector<1x128xf32> to vector<256x128xf32>
    %5 = arith.addf %2, %4 : vector<256x128xf32>
    %6 = math.tanh %5 : vector<256x128xf32>
    %7 = arith.truncf %6 : vector<256x128xf32> to vector<256x128xbf16>
    %c0_5 = arith.constant 0 : index
    %c0_6 = arith.constant 0 : index
    %8 = vector.load %arg4[%c0_5, %c0_6] : memref<128x384xbf16, #tpu.memory_space<vmem>>, vector<128x384xbf16>
    %cst_7 = arith.constant dense<0.000000e+00> : vector<256x384xf32>
    %9 = tpu.matmul %7, %8, %cst_7 {dimension_numbers = #tpu.dot_dimension_numbers<[1], [0], [0], [1], [0, 0, 1, 1], [], []>} : vector<256x128xbf16>, vector<128x384xbf16>, vector<256x384xf32> -> vector<256x384xf32>
    %c0_8 = arith.constant 0 : index
    %c0_9 = arith.constant 0 : index
    %10 = vector.load %arg5[%c0_8, %c0_9] : memref<1x384xf32, #tpu.memory_space<vmem>>, vector<1x384xf32>
    %11 = vector.broadcast %10 : vector<1x384xf32> to vector<256x384xf32>
    %12 = arith.addf %9, %11 : vector<256x384xf32>
    %13 = arith.negf %12 : vector<256x384xf32>
    %14 = math.exp %13 : vector<256x384xf32>
    %cst_10 = arith.constant 1.000000e+00 : f32
    %15 = vector.broadcast %cst_10 : f32 to vector<256x384xf32>
    %16 = arith.addf %15, %14 : vector<256x384xf32>
    %17 = arith.divf %15, %16 : vector<256x384xf32>
    %c0_11 = arith.constant 0 : index
    %c0_12 = arith.constant 0 : index
    %18 = vector.load %arg6[%c0_11, %c0_12] : memref<256x384xf32, #tpu.memory_space<vmem>>, vector<256x384xf32>
    tpu.vector_store %arg6[%c0_11, %c0_12], %17 {strides = array<i32>} : memref<256x384xf32, #tpu.memory_space<vmem>>, vector<256x384xf32>,
    return
  }
  func.func @transform_0(%arg0: i32) -> (i32, i32) {
    %c0_i32 = arith.constant 0 : i32
    %c0_i32_0 = arith.constant 0 : i32
    return %arg0, %c0_i32 : i32, i32
  }
  func.func @transform_1(%arg0: i32) -> (i32, i32) {
    %c0_i32 = arith.constant 0 : i32
    %c0_i32_0 = arith.constant 0 : i32
    %c0_i32_1 = arith.constant 0 : i32
    return %c0_i32, %c0_i32_0 : i32, i32
  }
  func.func @transform_2(%arg0: i32) -> (i32, i32) {
    %c0_i32 = arith.constant 0 : i32
    %c0_i32_0 = arith.constant 0 : i32
    %c0_i32_1 = arith.constant 0 : i32
    return %c0_i32, %c0_i32_0 : i32, i32
  }
  func.func @transform_3(%arg0: i32) -> (i32, i32) {
    %c0_i32 = arith.constant 0 : i32
    %c0_i32_0 = arith.constant 0 : i32
    %c0_i32_1 = arith.constant 0 : i32
    return %c0_i32, %c0_i32_0 : i32, i32
  }
  func.func @transform_4(%arg0: i32) -> (i32, i32) {
    %c0_i32 = arith.constant 0 : i32
    %c0_i32_0 = arith.constant 0 : i32
    %c0_i32_1 = arith.constant 0 : i32
    return %c0_i32, %c0_i32_0 : i32, i32
  }
  func.func @transform_5(%arg0: i32) -> (i32, i32) {
    %c0_i32 = arith.constant 0 : i32
    %c0_i32_0 = arith.constant 0 : i32
    return %arg0, %c0_i32 : i32, i32
  }
}

</mosaic_0001>

<llo_original>
// kernel: tpu_custom_call.1
$region0: #{tpu_custom_call.1}
  #allocation0 [shape = 'u32[]', space=smem, size = 0x4, offset = 0x4, fixed_abs, tag = 'smem constant byte address 0x4 - core index']
  #allocation1 [shape = 'u32[144,128]{1,0:T(1,128)}', space=vmem, size = 0x12000, scoped, tag = 'internal scratch']
  %s0 = inlined_call_operand.hbm [shape: bf16[512,384], index: 0, kind: input, shape index: {}]
  %s1 = inlined_call_operand.hbm [shape: bf16[384,128], index: 1, kind: input, shape index: {}]
  %s2 = inlined_call_operand.vmem [shape: f32[1,128], index: 2, kind: input, shape index: {}]
  %s3 = inlined_call_operand.hbm [shape: bf16[128,384], index: 3, kind: input, shape index: {}]
  %s4 = inlined_call_operand.vmem [shape: f32[1,384], index: 4, kind: input, shape index: {}]
  %s5 = inlined_call_operand.hbm [shape: f32[512,384], index: 5, kind: output, shape index: {}]
  %s6 = sld [smem:[#allocation0]]
  $region65: #{tpu_custom_call.1} parent=0
    _
  %s8 = ssub.s32 1, %s6
  %s9 = scalar_select 0, %s8, %s6
  $region1: #{tpu_custom_call.1} parent=0
    #allocation2 [shape = 'u8[393216]{0}', space=vmem, size = 0x60000, scoped, tag = 'input window, operand 0']
    #allocation3 [shape = 's32[2]{0}', space=sflag, size = 0x8, scoped, tag = 'scoped memory for tpu_custom_call.1']
    #allocation4 [shape = 's32[2]{0}', space=sflag, size = 0x8, scoped, tag = 'scoped memory for tpu_custom_call.1']
    #allocation5 [shape = 'u8[98304]{0}', space=vmem, size = 0x18000, scoped, tag = 'input window, operand 1, single buffered']
    #allocation6 [shape = 's32[1]{0}', space=sflag, size = 0x4, scoped, tag = 'scoped memory for tpu_custom_call.1']
    #allocation7 [shape = 'u8[98304]{0}', space=vmem, size = 0x18000, scoped, tag = 'input window, operand 3, single buffered']
    #allocation8 [shape = 'u8[786432]{0}', space=vmem, size = 0xc0000, scoped, tag = 'output window, operand 0']
    %10 = vsyncpa [#allocation3], 0
    %s11 = scalar_lea.sflag [#allocation3], 1
    %12 = vsyncpa %s11, 0
    %13 = vsyncpa [#allocation6], 0
    %14 = vsyncpa [#allocation4], 0
    %s15 = scalar_lea.sflag [#allocation4], 1
    %16 = vsyncpa %s15, 0
    loop: start=0, step=1, limit=4
    $region2: #{tpu_custom_call.1} parent=1 // loop_pre_header
      _
    $region3: #{tpu_custom_call.1} parent=1 // loop_header
      %s18 = sphi 0, %s22
      %p19 = scmp.ge.s32.totalorder %s18, 4
      %s28 = sphi 0, %s30
      %s31 = sphi 0, %s28
      %s32 = sphi 0, %s31
      %s48 = sphi 0, %s32
      %s52 = sphi 0, %s52
      %s54 = sphi 0, %s52
      %s55 = sphi 0, %s54
      %s69 = sphi 0, %s55
      %s73 = sphi 0, %s73
      %s75 = sphi 0, %s73
      %s76 = sphi 0, %s75
      %s90 = sphi 0, %s76
      %s94 = sphi 0, %s94
      %s96 = sphi 0, %s94
      %s97 = sphi 0, %s96
      %s111 = sphi 0, %s97
      %s115 = sphi 0, %s115
      %s117 = sphi 0, %s115
      %s118 = sphi 0, %s117
      %s132 = sphi 0, %s118
      %s138 = sphi 0, %s140
      %s141 = sphi 0, %s138
      %s142 = sphi 0, %s141
      %s158 = sphi 0, %s142
    $region4: #{tpu_custom_call.1} parent=1 // loop_header_branch
      %21 = sbr.rel (%p19) target = $region8
    $region5: #{tpu_custom_call.1} parent=1 // loop_body
      %s23 = ssub.s32 %s18, 1
      %s24 = ssub.s32 %s18, 2
      %s25 = sadd.s32 %s18, 1
      %s26 = ssub.s32 %s18, %s25
      %p27 = scmp.eq.s32.totalorder %s26, 0
      %s29 = sadd.s32 %s28, 1
      %s30 = scalar_select %p27, %s28, %s29
      %p33 = pneg %p27
      %p34 = scmp.eq.s32.totalorder %s18, 1
      %p35 = por %p33, %p34
      %p36 = scmp.ne.s32.totalorder %s28, %s31
      %p37 = scmp.eq.s32.totalorder %s18, 0
      %p38 = por %p36, %p37
      %p39 = scmp.ne.s32.totalorder %s28, %s31
      %p40 = scmp.eq.s32.totalorder %s23, 1
      %p41 = por %p39, %p40
      %p42 = scmp.ne.s32.totalorder %s31, %s32
      %p43 = scmp.eq.s32.totalorder %s23, 0
      %p44 = por %p42, %p43
      %p45 = scmp.ne.s32.totalorder %s31, %s32
      %p46 = scmp.eq.s32.totalorder %s24, 1
      %p47 = por %p45, %p46
      %p49 = scmp.ne.s32.totalorder %s32, %s48
      %p50 = scmp.eq.s32.totalorder %s24, 0
      %p51 = por %p49, %p50
      %s53 = sadd.s32 %s52, 1
      %p56 = scmp.eq.s32.totalorder %s18, 1
      %p57 = scmp.ne.s32.totalorder %s52, %s54
      %p58 = scmp.eq.s32.totalorder %s18, 0
      %p59 = por %p57, %p58
      %p60 = scmp.ne.s32.totalorder %s52, %s54
      %p61 = scmp.eq.s32.totalorder %s23, 1
      %p62 = por %p60, %p61
      %p63 = scmp.ne.s32.totalorder %s54, %s55
      %p64 = scmp.eq.s32.totalorder %s23, 0
      %p65 = por %p63, %p64
      %p66 = scmp.ne.s32.totalorder %s54, %s55
      %p67 = scmp.eq.s32.totalorder %s24, 1
      %p68 = por %p66, %p67
      %p70 = scmp.ne.s32.totalorder %s55, %s69
      %p71 = scmp.eq.s32.totalorder %s24, 0
      %p72 = por %p70, %p71
      %s74 = sadd.s32 %s73, 1
      %p77 = scmp.eq.s32.totalorder %s18, 1
      %p78 = scmp.ne.s32.totalorder %s73, %s75
      %p79 = scmp.eq.s32.totalorder %s18, 0
      %p80 = por %p78, %p79
      %p81 = scmp.ne.s32.totalorder %s73, %s75
      %p82 = scmp.eq.s32.totalorder %s23, 1
      %p83 = por %p81, %p82
      %p84 = scmp.ne.s32.totalorder %s75, %s76
      %p85 = scmp.eq.s32.totalorder %s23, 0
      %p86 = por %p84, %p85
      %p87 = scmp.ne.s32.totalorder %s75, %s76
      %p88 = scmp.eq.s32.totalorder %s24, 1
      %p89 = por %p87, %p88
      %p91 = scmp.ne.s32.totalorder %s76, %s90
      %p92 = scmp.eq.s32.totalorder %s24, 0
      %p93 = por %p91, %p92
      %s95 = sadd.s32 %s94, 1
      %p98 = scmp.eq.s32.totalorder %s18, 1
      %p99 = scmp.ne.s32.totalorder %s94, %s96
      %p100 = scmp.eq.s32.totalorder %s18, 0
      %p101 = por %p99, %p100
      %p102 = scmp.ne.s32.totalorder %s94, %s96
      %p103 = scmp.eq.s32.totalorder %s23, 1
      %p104 = por %p102, %p103
      %p105 = scmp.ne.s32.totalorder %s96, %s97
      %p106 = scmp.eq.s32.totalorder %s23, 0
      %p107 = por %p105, %p106
      %p108 = scmp.ne.s32.totalorder %s96, %s97
      %p109 = scmp.eq.s32.totalorder %s24, 1
      %p110 = por %p108, %p109
      %p112 = scmp.ne.s32.totalorder %s97, %s111
      %p113 = scmp.eq.s32.totalorder %s24, 0
      %p114 = por %p112, %p113
      %s116 = sadd.s32 %s115, 1
      %p119 = scmp.eq.s32.totalorder %s18, 1
      %p120 = scmp.ne.s32.totalorder %s115, %s117
      %p121 = scmp.eq.s32.totalorder %s18, 0
      %p122 = por %p120, %p121
      %p123 = scmp.ne.s32.totalorder %s115, %s117
      %p124 = scmp.eq.s32.totalorder %s23, 1
      %p125 = por %p123, %p124
      %p126 = scmp.ne.s32.totalorder %s117, %s118
      %p127 = scmp.eq.s32.totalorder %s23, 0
      %p128 = por %p126, %p127
      %p129 = scmp.ne.s32.totalorder %s117, %s118
      %p130 = scmp.eq.s32.totalorder %s24, 1
      %p131 = por %p129, %p130
      %p133 = scmp.ne.s32.totalorder %s118, %s132
      %p134 = scmp.eq.s32.totalorder %s24, 0
      %p135 = por %p133, %p134
      %s136 = ssub.s32 %s18, %s25
      %p137 = scmp.eq.s32.totalorder %s136, 0
      %s139 = sadd.s32 %s138, 1
      %s140 = scalar_select %p137, %s138, %s139
      %p143 = pneg %p137
      %p144 = scmp.eq.s32.totalorder %s18, 1
      %p145 = por %p143, %p144
      %p146 = scmp.ne.s32.totalorder %s138, %s141
      %p147 = scmp.eq.s32.totalorder %s18, 0
      %p148 = por %p146, %p147
      %p149 = scmp.ne.s32.totalorder %s138, %s141
      %p150 = scmp.eq.s32.totalorder %s23, 1
      %p151 = por %p149, %p150
      %p152 = scmp.ne.s32.totalorder %s141, %s142
      %p153 = scmp.eq.s32.totalorder %s23, 0
      %p154 = por %p152, %p153
      %p155 = scmp.ne.s32.totalorder %s141, %s142
      %p156 = scmp.eq.s32.totalorder %s24, 1
      %p157 = por %p155, %p156
      %p159 = scmp.ne.s32.totalorder %s142, %s158
      %p160 = scmp.eq.s32.totalorder %s24, 0
      %p161 = por %p159, %p160
      %p162 = scmp.le.s32.totalorder 1, %s18
      %p163 = scmp.lt.s32.totalorder %s18, 3
      %p164 = pnand %p162, %p163
      %p165 = pneg %p164
      // Predicated region
      $region9: #{tpu_custom_call.1} parent=5 // pred_check
        _
      $region10: #{tpu_custom_call.1} parent=5 // pred_check_branch
        %167 = sbr.rel (%p164) target = $region12
      $region11: #{tpu_custom_call.1} parent=5 // pred_region
        %s168 = ssub.s32 %s18, 1
        // Predicated region
        $region13: #{tpu_custom_call.1} parent=11 // pred_check
          %p169 = pneg %p65
        $region14: #{tpu_custom_call.1} parent=11 // pred_check_branch
          %171 = sbr.rel (%p169) target = $region16
        $region15: #{tpu_custom_call.1} parent=11 // pred_region
          %s173 = ssub.s32 3072, 3072
          %174 = vsyncadd [#allocation6], %s173
          %s175 = sshll.u32 [#allocation5], 4
          %s176 = int_to_ptr.vmem [resolvable:$true] %s175
          %181 = dma.hbm_to_vmem [thread:$0]  %s1, 3072, %s176, [#allocation6], 64, 64, 4
        $region16: #{tpu_custom_call.1} parent=11 // pred_fallthru
          _
        // Predicated region
        $region17: #{tpu_custom_call.1} parent=11 // pred_check
          %p182 = pneg %p86
        $region18: #{tpu_custom_call.1} parent=11 // pred_check_branch
          %184 = sbr.rel (%p182) target = $region20
        $region19: #{tpu_custom_call.1} parent=11 // pred_region
          _
        $region20: #{tpu_custom_call.1} parent=11 // pred_fallthru
          _
        // Predicated region
        $region21: #{tpu_custom_call.1} parent=11 // pred_check
          %p185 = pneg %p107
        $region22: #{tpu_custom_call.1} parent=11 // pred_check_branch
          %187 = sbr.rel (%p185) target = $region24
        $region23: #{tpu_custom_call.1} parent=11 // pred_region
          %s189 = ssub.s32 3072, 3072
          %190 = vsyncadd [#allocation6], %s189
          %s191 = sshll.u32 [#allocation7], 4
          %s192 = int_to_ptr.vmem [resolvable:$true] %s191
          %197 = dma.hbm_to_vmem [thread:$0]  %s3, 3072, %s192, [#allocation6], 192, 192, 12
        $region24: #{tpu_custom_call.1} parent=11 // pred_fallthru
          _
        // Predicated region
        $region25: #{tpu_custom_call.1} parent=11 // pred_check
          %p198 = pneg %p128
        $region26: #{tpu_custom_call.1} parent=11 // pred_check_branch
          %200 = sbr.rel (%p198) target = $region28
        $region27: #{tpu_custom_call.1} parent=11 // pred_region
          _
        $region28: #{tpu_custom_call.1} parent=11 // pred_fallthru
          _
      $region12: #{tpu_custom_call.1} parent=5 // pred_fallthru
        _
      %p201 = scmp.lt.s32.totalorder %s18, 2
      // Predicated region
      $region29: #{tpu_custom_call.1} parent=5 // pred_check
        %p202 = pneg %p201
      $region30: #{tpu_custom_call.1} parent=5 // pred_check_branch
        %204 = sbr.rel (%p202) target = $region32
      $region31: #{tpu_custom_call.1} parent=5 // pred_region
        // Predicated region
        $region33: #{tpu_custom_call.1} parent=31 // pred_check
          %p205 = pneg %p38
        $region34: #{tpu_custom_call.1} parent=31 // pred_check_branch
          %207 = sbr.rel (%p205) target = $region36
        $region35: #{tpu_custom_call.1} parent=31 // pred_region
          %s208 = sand.u32 %s28, 1
          %s209 = scalar_lea.sflag [#allocation3], %s208
          %s210 = sand.u32 %s28, 1
          %s211 = smul.addr %s210, 384
          %s212 = scalar_lea.vmem [#allocation2], %s211
          %s213 = smul.u32 32, %s18
          %s215 = ssub.s32 6144, 6144
          %216 = vsyncadd %s209, %s215
          %s217 = smul.addr %s213, 3
          %s218 = smul.addr %s217, 64
          %s219 = scalar_lea.hbm %s0, %s218
          %s220 = sshll.u32 %s212, 4
          %s221 = int_to_ptr.vmem [resolvable:$true] %s220
          %226 = dma.hbm_to_vmem [thread:$0]  %s219, 6144, %s221, %s209, 192, 192, 12
        $region36: #{tpu_custom_call.1} parent=31 // pred_fallthru
          _
      $region32: #{tpu_custom_call.1} parent=5 // pred_fallthru
        _
      %p227 = scmp.le.s32.totalorder 1, %s18
      %p228 = scmp.lt.s32.totalorder %s18, 3
      %p229 = pnand %p227, %p228
      %p230 = pneg %p229
      // Predicated region
      $region37: #{tpu_custom_call.1} parent=5 // pred_check
        _
      $region38: #{tpu_custom_call.1} parent=5 // pred_check_branch
        %232 = sbr.rel (%p229) target = $region40
      $region39: #{tpu_custom_call.1} parent=5 // pred_region
        %s233 = ssub.s32 %s18, 1
        %s234 = sand.u32 %s31, 1
        %s235 = scalar_lea.sflag [#allocation3], %s234
        %s236 = sand.u32 %s31, 1
        %s237 = smul.addr %s236, 384
        %s238 = scalar_lea.vmem [#allocation2], %s237
        // Predicated region
        $region41: #{tpu_custom_call.1} parent=39 // pred_check
          %p239 = pneg %p44
        $region42: #{tpu_custom_call.1} parent=39 // pred_check_branch
          %241 = sbr.rel (%p239) target = $region44
        $region43: #{tpu_custom_call.1} parent=39 // pred_region
          %242 = dma.done %s235, 6144
        $region44: #{tpu_custom_call.1} parent=39 // pred_fallthru
          _
        // Predicated region
        $region45: #{tpu_custom_call.1} parent=39 // pred_check
          %p243 = pneg %p65
        $region46: #{tpu_custom_call.1} parent=39 // pred_check_branch
          %245 = sbr.rel (%p243) target = $region48
        $region47: #{tpu_custom_call.1} parent=39 // pred_region
          %246 = dma.done [#allocation6], 3072
        $region48: #{tpu_custom_call.1} parent=39 // pred_fallthru
          _
        // Predicated region
        $region49: #{tpu_custom_call.1} parent=39 // pred_check
          %p247 = pneg %p107
        $region50: #{tpu_custom_call.1} parent=39 // pred_check_branch
          %249 = sbr.rel (%p247) target = $region52
        $region51: #{tpu_custom_call.1} parent=39 // pred_region
          %250 = dma.done [#allocation6], 3072
        $region52: #{tpu_custom_call.1} parent=39 // pred_fallthru
          _
        %s251 = sand.u32 %s31, 1
        %s252 = scalar_lea.sflag [#allocation3], %s251
        %s253 = sand.u32 %s31, 1
        %s254 = smul.addr %s253, 384
        %s255 = scalar_lea.vmem [#allocation2], %s254
        %p256 = pneg %p44
        %p257 = pneg %p41
        %p258 = pneg %p65
        %p259 = pneg %p62
        %p260 = pneg %p86
        %p261 = pneg %p83
        %p262 = pneg %p107
        %p263 = pneg %p104
        %p264 = pneg %p128
        %p265 = pneg %p125
        %p266 = pneg %p154
        %p267 = pneg %p151
        %s268 = sand.u32 %s141, 1
        %s269 = scalar_lea.sflag [#allocation4], %s268
        %s270 = sand.u32 %s141, 1
        %s271 = smul.addr %s270, 768
        %s272 = scalar_lea.vmem [#allocation8], %s271
        %s273 = smul.u32 32, %s23
        %s274 = smul.u32 32, %s23
        %v276 = vld [vmem:[%s238] sm:$0xff]
        %v277 = vld [vmem:[%s238 + $0x8] sm:$0xf]
        %v278 = vld [vmem:[%s238 + $0xc] sm:$0xff]
        %v279 = vld [vmem:[%s238 + $0x14] sm:$0xf]
        %v280 = vld [vmem:[%s238 + $0x18] sm:$0xff]
        %v281 = vld [vmem:[%s238 + $0x20] sm:$0xf]
        %v282 = vld [vmem:[%s238 + $0x24] sm:$0xff]
        %v283 = vld [vmem:[%s238 + $0x2c] sm:$0xf]
        %v284 = vld [vmem:[%s238 + $0x30] sm:$0xff]
        %v285 = vld [vmem:[%s238 + $0x38] sm:$0xf]
        %v286 = vld [vmem:[%s238 + $0x3c] sm:$0xff]
        %v287 = vld [vmem:[%s238 + $0x44] sm:$0xf]
        %v288 = vld [vmem:[%s238 + $0x48] sm:$0xff]
        %v289 = vld [vmem:[%s238 + $0x50] sm:$0xf]
        %v290 = vld [vmem:[%s238 + $0x54] sm:$0xff]
        %v291 = vld [vmem:[%s238 + $0x5c] sm:$0xf]
        %v292 = vld [vmem:[%s238 + $0x60] sm:$0xff]
        %v293 = vld [vmem:[%s238 + $0x68] sm:$0xf]
        %v294 = vld [vmem:[%s238 + $0x6c] sm:$0xff]
        %v295 = vld [vmem:[%s238 + $0x74] sm:$0xf]
        %v296 = vld [vmem:[%s238 + $0x78] sm:$0xff]
        %v297 = vld [vmem:[%s238 + $0x80] sm:$0xf]
        %v298 = vld [vmem:[%s238 + $0x84] sm:$0xff]
        %v299 = vld [vmem:[%s238 + $0x8c] sm:$0xf]
        %v300 = vld [vmem:[%s238 + $0x90] sm:$0xff]
        %v301 = vld [vmem:[%s238 + $0x98] sm:$0xf]
        %v302 = vld [vmem:[%s238 + $0x9c] sm:$0xff]
        %v303 = vld [vmem:[%s238 + $0xa4] sm:$0xf]
        %v304 = vld [vmem:[%s238 + $0xa8] sm:$0xff]
        %v305 = vld [vmem:[%s238 + $0xb0] sm:$0xf]
        %v306 = vld [vmem:[%s238 + $0xb4] sm:$0xff]
        %v307 = vld [vmem:[%s238 + $0xbc] sm:$0xf]
        %v308 = vld [vmem:[%s238 + $0xc0] sm:$0xff]
        %v309 = vld [vmem:[%s238 + $0xc8] sm:$0xf]
        %v310 = vld [vmem:[%s238 + $0xcc] sm:$0xff]
        %v311 = vld [vmem:[%s238 + $0xd4] sm:$0xf]
        %v312 = vld [vmem:[%s238 + $0xd8] sm:$0xff]
        %v313 = vld [vmem:[%s238 + $0xe0] sm:$0xf]
        %v314 = vld [vmem:[%s238 + $0xe4] sm:$0xff]
        %v315 = vld [vmem:[%s238 + $0xec] sm:$0xf]
        %v316 = vld [vmem:[%s238 + $0xf0] sm:$0xff]
        %v317 = vld [vmem:[%s238 + $0xf8] sm:$0xf]
        %v318 = vld [vmem:[%s238 + $0xfc] sm:$0xff]
        %v319 = vld [vmem:[%s238 + $0x104] sm:$0xf]
        %v320 = vld [vmem:[%s238 + $0x108] sm:$0xff]
        %v321 = vld [vmem:[%s238 + $0x110] sm:$0xf]
        %v322 = vld [vmem:[%s238 + $0x114] sm:$0xff]
        %v323 = vld [vmem:[%s238 + $0x11c] sm:$0xf]
        %v324 = vld [vmem:[%s238 + $0x120] sm:$0xff]
        %v325 = vld [vmem:[%s238 + $0x128] sm:$0xf]
        %v326 = vld [vmem:[%s238 + $0x12c] sm:$0xff]
        %v327 = vld [vmem:[%s238 + $0x134] sm:$0xf]
        %v328 = vld [vmem:[%s238 + $0x138] sm:$0xff]
        %v329 = vld [vmem:[%s238 + $0x140] sm:$0xf]
        %v330 = vld [vmem:[%s238 + $0x144] sm:$0xff]
        %v331 = vld [vmem:[%s238 + $0x14c] sm:$0xf]
        %v332 = vld [vmem:[%s238 + $0x150] sm:$0xff]
        %v333 = vld [vmem:[%s238 + $0x158] sm:$0xf]
        %v334 = vld [vmem:[%s238 + $0x15c] sm:$0xff]
        %v335 = vld [vmem:[%s238 + $0x164] sm:$0xf]
        %v336 = vld [vmem:[%s238 + $0x168] sm:$0xff]
        %v337 = vld [vmem:[%s238 + $0x170] sm:$0xf]
        %v338 = vld [vmem:[%s238 + $0x174] sm:$0xff]
        %v339 = vld [vmem:[%s238 + $0x17c] sm:$0xf]
        %v340 = vld [vmem:[#allocation5] sm:$0xf]
        %v341 = vld [vmem:[#allocation5 + $0x4] sm:$0xf]
        %v342 = vld [vmem:[#allocation5 + $0x8] sm:$0xf]
        %v343 = vld [vmem:[#allocation5 + $0xc] sm:$0xf]
        %v344 = vld [vmem:[#allocation5 + $0x10] sm:$0xf]
        %v345 = vld [vmem:[#allocation5 + $0x14] sm:$0xf]
        %v346 = vld [vmem:[#allocation5 + $0x18] sm:$0xf]
        %v347 = vld [vmem:[#allocation5 + $0x1c] sm:$0xf]
        %v348 = vld [vmem:[#allocation5 + $0x20] sm:$0xf]
        %v349 = vld [vmem:[#allocation5 + $0x24] sm:$0xf]
        %v350 = vld [vmem:[#allocation5 + $0x28] sm:$0xf]
        %v351 = vld [vmem:[#allocation5 + $0x2c] sm:$0xf]
        %v352 = vld [vmem:[#allocation5 + $0x30] sm:$0xf]
        %v353 = vld [vmem:[#allocation5 + $0x34] sm:$0xf]
        %v354 = vld [vmem:[#allocation5 + $0x38] sm:$0xf]
        %v355 = vld [vmem:[#allocation5 + $0x3c] sm:$0xf]
        %v356 = vld [vmem:[#allocation5 + $0x40] sm:$0xf]
        %v357 = vld [vmem:[#allocation5 + $0x44] sm:$0xf]
        %v358 = vld [vmem:[#allocation5 + $0x48] sm:$0xf]
        %v359 = vld [vmem:[#allocation5 + $0x4c] sm:$0xf]
        %v360 = vld [vmem:[#allocation5 + $0x50] sm:$0xf]
        %v361 = vld [vmem:[#allocation5 + $0x54] sm:$0xf]
        %v362 = vld [vmem:[#allocation5 + $0x58] sm:$0xf]
        %v363 = vld [vmem:[#allocation5 + $0x5c] sm:$0xf]
        %v364 = vld [vmem:[#allocation5 + $0x60] sm:$0xf]
        %v365 = vld [vmem:[#allocation5 + $0x64] sm:$0xf]
        %v366 = vld [vmem:[#allocation5 + $0x68] sm:$0xf]
        %v367 = vld [vmem:[#allocation5 + $0x6c] sm:$0xf]
        %v368 = vld [vmem:[#allocation5 + $0x70] sm:$0xf]
        %v369 = vld [vmem:[#allocation5 + $0x74] sm:$0xf]
        %v370 = vld [vmem:[#allocation5 + $0x78] sm:$0xf]
        %v371 = vld [vmem:[#allocation5 + $0x7c] sm:$0xf]
        %v372 = vld [vmem:[#allocation5 + $0x80] sm:$0xf]
        %v373 = vld [vmem:[#allocation5 + $0x84] sm:$0xf]
        %v374 = vld [vmem:[#allocation5 + $0x88] sm:$0xf]
        %v375 = vld [vmem:[#allocation5 + $0x8c] sm:$0xf]
        %v376 = vld [vmem:[#allocation5 + $0x90] sm:$0xf]
        %v377 = vld [vmem:[#allocation5 + $0x94] sm:$0xf]
        %v378 = vld [vmem:[#allocation5 + $0x98] sm:$0xf]
        %v379 = vld [vmem:[#allocation5 + $0x9c] sm:$0xf]
        %v380 = vld [vmem:[#allocation5 + $0xa0] sm:$0xf]
        %v381 = vld [vmem:[#allocation5 + $0xa4] sm:$0xf]
        %v382 = vld [vmem:[#allocation5 + $0xa8] sm:$0xf]
        %v383 = vld [vmem:[#allocation5 + $0xac] sm:$0xf]
        %v384 = vld [vmem:[#allocation5 + $0xb0] sm:$0xf]
        %v385 = vld [vmem:[#allocation5 + $0xb4] sm:$0xf]
        %v386 = vld [vmem:[#allocation5 + $0xb8] sm:$0xf]
        %v387 = vld [vmem:[#allocation5 + $0xbc] sm:$0xf]
        %v388 = vld [vmem:[%s2] sm:$0x1]
        %v390 = vlaneseq
        %v391 = vshrl.u32 %v390, 7
        %v392 = vsub.s32 0, %v391
        %v393 = vrot.slane %v388, %v392
        %v459 = vunpack.c.l.b16 %v276
        %v460 = vunpack.c.h.b16 %v276
        %v461 = vunpack.c.l.b16 %v277
        %v462 = vunpack.c.l.b16 %v278
        %v463 = vunpack.c.h.b16 %v278
        %v464 = vunpack.c.l.b16 %v279
        %v465 = vunpack.c.l.b16 %v280
        %v466 = vunpack.c.h.b16 %v280
        %v467 = vunpack.c.l.b16 %v281
        %v468 = vunpack.c.l.b16 %v282
        %v469 = vunpack.c.h.b16 %v282
        %v470 = vunpack.c.l.b16 %v283
        %v471 = vunpack.c.l.b16 %v284
        %v472 = vunpack.c.h.b16 %v284
        %v473 = vunpack.c.l.b16 %v285
        %v474 = vunpack.c.l.b16 %v286
        %v475 = vunpack.c.h.b16 %v286
        %v476 = vunpack.c.l.b16 %v287
        %v477 = vunpack.c.l.b16 %v288
        %v478 = vunpack.c.h.b16 %v288
        %v479 = vunpack.c.l.b16 %v289
        %v480 = vunpack.c.l.b16 %v290
        %v481 = vunpack.c.h.b16 %v290
        %v482 = vunpack.c.l.b16 %v291
        %v483 = vunpack.c.l.b16 %v292
        %v484 = vunpack.c.h.b16 %v292
        %v485 = vunpack.c.l.b16 %v293
        %v486 = vunpack.c.l.b16 %v294
        %v487 = vunpack.c.h.b16 %v294
        %v488 = vunpack.c.l.b16 %v295
        %v489 = vunpack.c.l.b16 %v296
        %v490 = vunpack.c.h.b16 %v296
        %v491 = vunpack.c.l.b16 %v297
        %v492 = vunpack.c.l.b16 %v298
        %v493 = vunpack.c.h.b16 %v298
        %v494 = vunpack.c.l.b16 %v299
        %v495 = vunpack.c.l.b16 %v300
        %v496 = vunpack.c.h.b16 %v300
        %v497 = vunpack.c.l.b16 %v301
        %v498 = vunpack.c.l.b16 %v302
        %v499 = vunpack.c.h.b16 %v302
        %v500 = vunpack.c.l.b16 %v303
        %v501 = vunpack.c.l.b16 %v304
        %v502 = vunpack.c.h.b16 %v304
        %v503 = vunpack.c.l.b16 %v305
        %v504 = vunpack.c.l.b16 %v306
        %v505 = vunpack.c.h.b16 %v306
        %v506 = vunpack.c.l.b16 %v307
        %v507 = vunpack.c.l.b16 %v308
        %v508 = vunpack.c.h.b16 %v308
        %v509 = vunpack.c.l.b16 %v309
        %v510 = vunpack.c.l.b16 %v310
        %v511 = vunpack.c.h.b16 %v310
        %v512 = vunpack.c.l.b16 %v311
        %v513 = vunpack.c.l.b16 %v312
        %v514 = vunpack.c.h.b16 %v312
        %v515 = vunpack.c.l.b16 %v313
        %v516 = vunpack.c.l.b16 %v314
        %v517 = vunpack.c.h.b16 %v314
        %v518 = vunpack.c.l.b16 %v315
        %v519 = vunpack.c.l.b16 %v316
        %v520 = vunpack.c.h.b16 %v316
        %v521 = vunpack.c.l.b16 %v317
        %v522 = vunpack.c.l.b16 %v318
        %v523 = vunpack.c.h.b16 %v318
        %v524 = vunpack.c.l.b16 %v319
        %v525 = vunpack.c.l.b16 %v320
        %v526 = vunpack.c.h.b16 %v320
        %v527 = vunpack.c.l.b16 %v321
        %v528 = vunpack.c.l.b16 %v322
        %v529 = vunpack.c.h.b16 %v322
        %v530 = vunpack.c.l.b16 %v323
        %v531 = vunpack.c.l.b16 %v324
        %v532 = vunpack.c.h.b16 %v324
        %v533 = vunpack.c.l.b16 %v325
        %v534 = vunpack.c.l.b16 %v326
        %v535 = vunpack.c.h.b16 %v326
        %v536 = vunpack.c.l.b16 %v327
        %v537 = vunpack.c.l.b16 %v328
        %v538 = vunpack.c.h.b16 %v328
        %v539 = vunpack.c.l.b16 %v329
        %v540 = vunpack.c.l.b16 %v330
        %v541 = vunpack.c.h.b16 %v330
        %v542 = vunpack.c.l.b16 %v331
        %v543 = vunpack.c.l.b16 %v332
        %v544 = vunpack.c.h.b16 %v332
        %v545 = vunpack.c.l.b16 %v333
        %v546 = vunpack.c.l.b16 %v334
        %v547 = vunpack.c.h.b16 %v334
        %v548 = vunpack.c.l.b16 %v335
        %v549 = vunpack.c.l.b16 %v336
        %v550 = vunpack.c.h.b16 %v336
        %v551 = vunpack.c.l.b16 %v337
        %v552 = vunpack.c.l.b16 %v338
        %v553 = vunpack.c.h.b16 %v338
        %v554 = vunpack.c.l.b16 %v339
        %v555 = vpack.c.b16 %v462, %v459
        %v556 = vpack.c.b16 %v463, %v460
        %v557 = vpack.c.b16 %v464, %v461
        %v558 = vpack.c.b16 %v468, %v465
        %v559 = vpack.c.b16 %v469, %v466
        %v560 = vpack.c.b16 %v470, %v467
        %v561 = vpack.c.b16 %v474, %v471
        %v562 = vpack.c.b16 %v475, %v472
        %v563 = vpack.c.b16 %v476, %v473
        %v564 = vpack.c.b16 %v480, %v477
        %v565 = vpack.c.b16 %v481, %v478
        %v566 = vpack.c.b16 %v482, %v479
        %v567 = vpack.c.b16 %v486, %v483
        %v568 = vpack.c.b16 %v487, %v484
        %v569 = vpack.c.b16 %v488, %v485
        %v570 = vpack.c.b16 %v492, %v489
        %v571 = vpack.c.b16 %v493, %v490
        %v572 = vpack.c.b16 %v494, %v491
        %v573 = vpack.c.b16 %v498, %v495
        %v574 = vpack.c.b16 %v499, %v496
        %v575 = vpack.c.b16 %v500, %v497
        %v576 = vpack.c.b16 %v504, %v501
        %v577 = vpack.c.b16 %v505, %v502
        %v578 = vpack.c.b16 %v506, %v503
        %v579 = vpack.c.b16 %v510, %v507
        %v580 = vpack.c.b16 %v511, %v508
        %v581 = vpack.c.b16 %v512, %v509
        %v582 = vpack.c.b16 %v516, %v513
        %v583 = vpack.c.b16 %v517, %v514
        %v584 = vpack.c.b16 %v518, %v515
        %v585 = vpack.c.b16 %v522, %v519
        %v586 = vpack.c.b16 %v523, %v520
        %v587 = vpack.c.b16 %v524, %v521
        %v588 = vpack.c.b16 %v528, %v525
        %v589 = vpack.c.b16 %v529, %v526
        %v590 = vpack.c.b16 %v530, %v527
        %v591 = vpack.c.b16 %v534, %v531
        %v592 = vpack.c.b16 %v535, %v532
        %v593 = vpack.c.b16 %v536, %v533
        %v594 = vpack.c.b16 %v540, %v537
        %v595 = vpack.c.b16 %v541, %v538
        %v596 = vpack.c.b16 %v542, %v539
        %v597 = vpack.c.b16 %v546, %v543
        %v598 = vpack.c.b16 %v547, %v544
        %v599 = vpack.c.b16 %v548, %v545
        %v600 = vpack.c.b16 %v552, %v549
        %v601 = vpack.c.b16 %v553, %v550
        %v602 = vpack.c.b16 %v554, %v551
        %v699 = vunpack.c.l.b16 %v340
        %v700 = vunpack.c.l.b16 %v341
        %v701 = vunpack.c.l.b16 %v342
        %v702 = vunpack.c.l.b16 %v343
        %v703 = vunpack.c.l.b16 %v344
        %v704 = vunpack.c.l.b16 %v345
        %v705 = vunpack.c.l.b16 %v346
        %v706 = vunpack.c.l.b16 %v347
        %v707 = vunpack.c.l.b16 %v348
        %v708 = vunpack.c.l.b16 %v349
        %v709 = vunpack.c.l.b16 %v350
        %v710 = vunpack.c.l.b16 %v351
        %v711 = vunpack.c.l.b16 %v352
        %v712 = vunpack.c.l.b16 %v353
        %v713 = vunpack.c.l.b16 %v354
        %v714 = vunpack.c.l.b16 %v355
        %v715 = vunpack.c.l.b16 %v356
        %v716 = vunpack.c.l.b16 %v357
        %v717 = vunpack.c.l.b16 %v358
        %v718 = vunpack.c.l.b16 %v359
        %v719 = vunpack.c.l.b16 %v360
        %v720 = vunpack.c.l.b16 %v361
        %v721 = vunpack.c.l.b16 %v362
        %v722 = vunpack.c.l.b16 %v363
        %v723 = vunpack.c.l.b16 %v364
        %v724 = vunpack.c.l.b16 %v365
        %v725 = vunpack.c.l.b16 %v366
        %v726 = vunpack.c.l.b16 %v367
        %v727 = vunpack.c.l.b16 %v368
        %v728 = vunpack.c.l.b16 %v369
        %v729 = vunpack.c.l.b16 %v370
        %v730 = vunpack.c.l.b16 %v371
        %v731 = vunpack.c.l.b16 %v372
        %v732 = vunpack.c.l.b16 %v373
        %v733 = vunpack.c.l.b16 %v374
        %v734 = vunpack.c.l.b16 %v375
        %v735 = vunpack.c.l.b16 %v376
        %v736 = vunpack.c.l.b16 %v377
        %v737 = vunpack.c.l.b16 %v378
        %v738 = vunpack.c.l.b16 %v379
        %v739 = vunpack.c.l.b16 %v380
        %v740 = vunpack.c.l.b16 %v381
        %v741 = vunpack.c.l.b16 %v382
        %v742 = vunpack.c.l.b16 %v383
        %v743 = vunpack.c.l.b16 %v384
        %v744 = vunpack.c.l.b16 %v385
        %v745 = vunpack.c.l.b16 %v386
        %v746 = vunpack.c.l.b16 %v387
        %v747 = vpack.c.b16 %v700, %v699
        %v748 = vpack.c.b16 %v702, %v701
        %v749 = vpack.c.b16 %v704, %v703
        %v750 = vpack.c.b16 %v706, %v705
        %v751 = vpack.c.b16 %v708, %v707
        %v752 = vpack.c.b16 %v710, %v709
        %v753 = vpack.c.b16 %v712, %v711
        %v754 = vpack.c.b16 %v714, %v713
        %v755 = vpack.c.b16 %v716, %v715
        %v756 = vpack.c.b16 %v718, %v717
        %v757 = vpack.c.b16 %v720, %v719
        %v758 = vpack.c.b16 %v722, %v721
        %v759 = vpack.c.b16 %v724, %v723
        %v760 = vpack.c.b16 %v726, %v725
        %v761 = vpack.c.b16 %v728, %v727
        %v762 = vpack.c.b16 %v730, %v729
        %v763 = vpack.c.b16 %v732, %v731
        %v764 = vpack.c.b16 %v734, %v733
        %v765 = vpack.c.b16 %v736, %v735
        %v766 = vpack.c.b16 %v738, %v737
        %v767 = vpack.c.b16 %v740, %v739
        %v768 = vpack.c.b16 %v742, %v741
        %v769 = vpack.c.b16 %v744, %v743
        %v770 = vpack.c.b16 %v746, %v745
        %795 = vmatprep.subr.bf16.mxu0 0
        %796 = vmatpush1.bf16.msra.mxu0 %v747
        %797 = vmatprep.subr.bf16.mxu0 0
        %798 = vmatpush1.bf16.msra.mxu0 %v748
        %799 = vmatprep.subr.bf16.mxu0 0
        %800 = vmatpush1.bf16.msra.mxu0 %v749
        %801 = vmatprep.subr.bf16.mxu0 0
        %802 = vmatpush1.bf16.msra.mxu0 %v750
        %803 = vmatprep.subr.bf16.mxu0 0
        %804 = vmatpush1.bf16.msra.mxu0 %v751
        %805 = vmatprep.subr.bf16.mxu0 0
        %806 = vmatpush1.bf16.msra.mxu0 %v752
        %807 = vmatprep.subr.bf16.mxu0 0
        %808 = vmatpush1.bf16.msra.mxu0 %v753
        %809 = vmatprep.subr.bf16.mxu0 0
        %810 = vmatpush1.bf16.msra.mxu0 %v754
        %811 = vmatprep.subr.bf16.mxu0 0
        %812 = vmatpush1.bf16.msra.mxu0 %v755
        %813 = vmatprep.subr.bf16.mxu0 0
        %814 = vmatpush1.bf16.msra.mxu0 %v756
        %815 = vmatprep.subr.bf16.mxu0 0
        %816 = vmatpush1.bf16.msra.mxu0 %v757
        %817 = vmatprep.subr.bf16.mxu0 0
        %818 = vmatpush1.bf16.msra.mxu0 %v758
        %819 = vmatprep.subr.bf16.mxu0 0
        %820 = vmatpush1.bf16.msra.mxu0 %v759
        %821 = vmatprep.subr.bf16.mxu0 0
        %822 = vmatpush1.bf16.msra.mxu0 %v760
        %823 = vmatprep.subr.bf16.mxu0 0
        %824 = vmatpush1.bf16.msra.mxu0 %v761
        %825 = vmatprep.subr.bf16.mxu0 0
        %826 = vmatpush1.bf16.msra.mxu0 %v762
        %827 = vmatprep.mubr.bf16.mxu0 %v556
        %828 = vmatmul.mubr.bf16.gmra.mrb[0].mxu0 %v555
        %v829 = vpop.f32.mrb[0].mxu0
        %v830 = vadd.f32 %v393, %v829
        %v831 = vpop.f32.mrb[0].mxu0
        %v832 = vpop.f32.mrb[0].mxu0
        %v833 = vadd.f32 %v393, %v832
        %v834 = vpop.f32.mrb[0].mxu0
        %835 = vmatprep.mubr.bf16.mxu0 %v559
        %836 = vmatmul.mubr.bf16.gmra.mrb[0].mxu0 %v558
        %v837 = vpop.f32.mrb[0].mxu0
        %v838 = vadd.f32 %v393, %v837
        %v839 = vpop.f32.mrb[0].mxu0
        %v840 = vpop.f32.mrb[0].mxu0
        %v841 = vadd.f32 %v393, %v840
        %v842 = vpop.f32.mrb[0].mxu0
        %843 = vmatprep.mubr.bf16.mxu0 %v562
        %844 = vmatmul.mubr.bf16.gmra.mrb[0].mxu0 %v561
        %v845 = vpop.f32.mrb[0].mxu0
        %v846 = vadd.f32 %v393, %v845
        %v847 = vpop.f32.mrb[0].mxu0
        %v848 = vpop.f32.mrb[0].mxu0
        %v849 = vadd.f32 %v393, %v848
        %v850 = vpop.f32.mrb[0].mxu0
        %851 = vmatprep.mubr.bf16.mxu0 %v565
        %852 = vmatmul.mubr.bf16.gmra.mrb[0].mxu0 %v564
        %v853 = vpop.f32.mrb[0].mxu0
        %v854 = vadd.f32 %v393, %v853
        %v855 = vpop.f32.mrb[0].mxu0
        %v856 = vpop.f32.mrb[0].mxu0
        %v857 = vadd.f32 %v393, %v856
        %v858 = vpop.f32.mrb[0].mxu0
        %859 = vmatprep.mubr.bf16.mxu0 %v568
        %860 = vmatmul.mubr.bf16.gmra.mrb[0].mxu0 %v567
        %v861 = vpop.f32.mrb[0].mxu0
        %v862 = vadd.f32 %v393, %v861
        %v863 = vpop.f32.mrb[0].mxu0
        %v864 = vpop.f32.mrb[0].mxu0
        %v865 = vadd.f32 %v393, %v864
        %v866 = vpop.f32.mrb[0].mxu0
        %867 = vmatprep.mubr.bf16.mxu0 %v571
        %868 = vmatmul.mubr.bf16.gmra.mrb[0].mxu0 %v570
        %v869 = vpop.f32.mrb[0].mxu0
        %v870 = vadd.f32 %v393, %v869
        %v871 = vpop.f32.mrb[0].mxu0
        %v872 = vpop.f32.mrb[0].mxu0
        %v873 = vadd.f32 %v393, %v872
        %v874 = vpop.f32.mrb[0].mxu0
        %875 = vmatprep.mubr.bf16.mxu0 %v574
        %876 = vmatmul.mubr.bf16.gmra.mrb[0].mxu0 %v573
        %v877 = vpop.f32.mrb[0].mxu0
        %v878 = vadd.f32 %v393, %v877
        %v879 = vpop.f32.mrb[0].mxu0
        %v880 = vpop.f32.mrb[0].mxu0
        %v881 = vadd.f32 %v393, %v880
        %v882 = vpop.f32.mrb[0].mxu0
        %883 = vmatprep.mubr.bf16.mxu0 %v577
        %884 = vmatmul.mubr.bf16.gmra.mrb[0].mxu0 %v576
        %v885 = vpop.f32.mrb[0].mxu0
        %v886 = vadd.f32 %v393, %v885
        %v887 = vpop.f32.mrb[0].mxu0
        %v888 = vpop.f32.mrb[0].mxu0
        %v889 = vadd.f32 %v393, %v888
        %v890 = vpop.f32.mrb[0].mxu0
        %891 = vmatprep.mubr.bf16.mxu0 %v580
        %892 = vmatmul.mubr.bf16.gmra.mrb[0].mxu0 %v579
        %v893 = vpop.f32.mrb[0].mxu0
        %v894 = vadd.f32 %v393, %v893
        %v895 = vpop.f32.mrb[0].mxu0
        %v896 = vpop.f32.mrb[0].mxu0
        %v897 = vadd.f32 %v393, %v896
        %v898 = vpop.f32.mrb[0].mxu0
        %899 = vmatprep.mubr.bf16.mxu0 %v583
        %900 = vmatmul.mubr.bf16.gmra.mrb[0].mxu0 %v582
        %v901 = vpop.f32.mrb[0].mxu0
        %v902 = vadd.f32 %v393, %v901
        %v903 = vpop.f32.mrb[0].mxu0
        %v904 = vpop.f32.mrb[0].mxu0
        %v905 = vadd.f32 %v393, %v904
        %v906 = vpop.f32.mrb[0].mxu0
        %907 = vmatprep.mubr.bf16.mxu0 %v586
        %908 = vmatmul.mubr.bf16.gmra.mrb[0].mxu0 %v585
        %v909 = vpop.f32.mrb[0].mxu0
        %v910 = vadd.f32 %v393, %v909
        %v911 = vpop.f32.mrb[0].mxu0
        %v912 = vpop.f32.mrb[0].mxu0
        %v913 = vadd.f32 %v393, %v912
        %v914 = vpop.f32.mrb[0].mxu0
        %915 = vmatprep.mubr.bf16.mxu0 %v589
        %916 = vmatmul.mubr.bf16.gmra.mrb[0].mxu0 %v588
        %v917 = vpop.f32.mrb[0].mxu0
        %v918 = vadd.f32 %v393, %v917
        %v919 = vpop.f32.mrb[0].mxu0
        %v920 = vpop.f32.mrb[0].mxu0
        %v921 = vadd.f32 %v393, %v920
        %v922 = vpop.f32.mrb[0].mxu0
        %923 = vmatprep.mubr.bf16.mxu0 %v592
        %924 = vmatmul.mubr.bf16.gmra.mrb[0].mxu0 %v591
        %v925 = vpop.f32.mrb[0].mxu0
        %v926 = vadd.f32 %v393, %v925
        %v927 = vpop.f32.mrb[0].mxu0
        %v928 = vpop.f32.mrb[0].mxu0
        %v929 = vadd.f32 %v393, %v928
        %v930 = vpop.f32.mrb[0].mxu0
        %931 = vmatprep.mubr.bf16.mxu0 %v595
        %932 = vmatmul.mubr.bf16.gmra.mrb[0].mxu0 %v594
        %v933 = vpop.f32.mrb[0].mxu0
        %v934 = vadd.f32 %v393, %v933
        %v935 = vpop.f32.mrb[0].mxu0
        %v936 = vpop.f32.mrb[0].mxu0
        %v937 = vadd.f32 %v393, %v936
        %v938 = vpop.f32.mrb[0].mxu0
        %939 = vmatprep.mubr.bf16.mxu0 %v598
        %940 = vmatmul.mubr.bf16.gmra.mrb[0].mxu0 %v597
        %v941 = vpop.f32.mrb[0].mxu0
        %v942 = vadd.f32 %v393, %v941
        %v943 = vpop.f32.mrb[0].mxu0
        %v944 = vpop.f32.mrb[0].mxu0
        %v945 = vadd.f32 %v393, %v944
        %v946 = vpop.f32.mrb[0].mxu0
        %947 = vmatprep.mubr.bf16.mxu0 %v601
        %948 = vmatmul.mubr.bf16.gmra.mrb[0].mxu0 %v600
        %v949 = vpop.f32.mrb[0].mxu0
        %v950 = vadd.f32 %v393, %v949
        %v951 = vpop.f32.mrb[0].mxu0
        %v952 = vpop.f32.mrb[0].mxu0
        %v953 = vadd.f32 %v393, %v952
        %v954 = vpop.f32.mrb[0].mxu0
        %955 = vdwg.mxu0
        %956 = vmatprep.subr.bf16.mxu0 0
        %957 = vmatpush1.bf16.msra.mxu0 %v763
        %958 = vmatprep.subr.bf16.mxu0 0
        %959 = vmatpush1.bf16.msra.mxu0 %v764
        %960 = vmatprep.subr.bf16.mxu0 0
        %961 = vmatpush1.bf16.msra.mxu0 %v765
        %962 = vmatprep.subr.bf16.mxu0 0
        %963 = vmatpush1.bf16.msra.mxu0 %v766
        %964 = vmatprep.subr.bf16.mxu0 0
        %965 = vmatpush1.bf16.msra.mxu0 %v767
        %966 = vmatprep.subr.bf16.mxu0 0
        %967 = vmatpush1.bf16.msra.mxu0 %v768
        %968 = vmatprep.subr.bf16.mxu0 0
        %969 = vmatpush1.bf16.msra.mxu0 %v769
        %970 = vmatprep.subr.bf16.mxu0 0
        %971 = vmatpush1.bf16.msra.mxu0 %v770
        %972 = vmatprep.subr.bf16.mxu0 0
        %973 = vmatpush1.bf16.msra.mxu0 0
        %974 = vmatprep.subr.bf16.mxu0 0
        %975 = vmatpush1.bf16.msra.mxu0 0
        %976 = vmatprep.subr.bf16.mxu0 0
        %977 = vmatpush1.bf16.msra.mxu0 0
        %978 = vmatprep.subr.bf16.mxu0 0
        %979 = vmatpush1.bf16.msra.mxu0 0
        %980 = vmatprep.subr.bf16.mxu0 0
        %981 = vmatpush1.bf16.msra.mxu0 0
        %982 = vmatprep.subr.bf16.mxu0 0
        %983 = vmatpush1.bf16.msra.mxu0 0
        %984 = vmatprep.subr.bf16.mxu0 0
        %985 = vmatpush1.bf16.msra.mxu0 0
        %986 = vmatprep.subr.bf16.mxu0 0
        %987 = vmatpush1.bf16.msra.mxu0 0
        %988 = vmatprep.mubr.bf16.mxu0 0
        %989 = vmatmul.mubr.bf16.gmra.mrb[0].mxu0 %v557
        %v990 = vpop.f32.mrb[0].mxu0
        %v991 = vadd.f32 %v830, %v990
        %v992 = vpop.f32.mrb[0].mxu0
        %v993 = vpop.f32.mrb[0].mxu0
        %v994 = vadd.f32 %v833, %v993
        %v995 = vpop.f32.mrb[0].mxu0
        %996 = vmatprep.mubr.bf16.mxu0 0
        %997 = vmatmul.mubr.bf16.gmra.mrb[0].mxu0 %v560
        %v998 = vpop.f32.mrb[0].mxu0
        %v999 = vadd.f32 %v838, %v998
        %v1000 = vpop.f32.mrb[0].mxu0
        %v1001 = vpop.f32.mrb[0].mxu0
        %v1002 = vadd.f32 %v841, %v1001
        %v1003 = vpop.f32.mrb[0].mxu0
        %1004 = vmatprep.mubr.bf16.mxu0 0
        %1005 = vmatmul.mubr.bf16.gmra.mrb[0].mxu0 %v563
        %v1006 = vpop.f32.mrb[0].mxu0
        %v1007 = vadd.f32 %v846, %v1006
        %v1008 = vpop.f32.mrb[0].mxu0
        %v1009 = vpop.f32.mrb[0].mxu0
        %v1010 = vadd.f32 %v849, %v1009
        %v1011 = vpop.f32.mrb[0].mxu0
        %1012 = vmatprep.mubr.bf16.mxu0 0
        %1013 = vmatmul.mubr.bf16.gmra.mrb[0].mxu0 %v566
        %v1014 = vpop.f32.mrb[0].mxu0
        %v1015 = vadd.f32 %v854, %v1014
        %v1016 = vpop.f32.mrb[0].mxu0
        %v1017 = vpop.f32.mrb[0].mxu0
        %v1018 = vadd.f32 %v857, %v1017
        %v1019 = vpop.f32.mrb[0].mxu0
        %1020 = vmatprep.mubr.bf16.mxu0 0
        %1021 = vmatmul.mubr.bf16.gmra.mrb[0].mxu0 %v569
        %v1022 = vpop.f32.mrb[0].mxu0
        %v1023 = vadd.f32 %v862, %v1022
        %v1024 = vpop.f32.mrb[0].mxu0
        %v1025 = vpop.f32.mrb[0].mxu0
        %v1026 = vadd.f32 %v865, %v1025
        %v1027 = vpop.f32.mrb[0].mxu0
        %1028 = vmatprep.mubr.bf16.mxu0 0
        %1029 = vmatmul.mubr.bf16.gmra.mrb[0].mxu0 %v572
        %v1030 = vpop.f32.mrb[0].mxu0
        %v1031 = vadd.f32 %v870, %v1030
        %v1032 = vpop.f32.mrb[0].mxu0
        %v1033 = vpop.f32.mrb[0].mxu0
        %v1034 = vadd.f32 %v873, %v1033
        %v1035 = vpop.f32.mrb[0].mxu0
        %1036 = vmatprep.mubr.bf16.mxu0 0
        %1037 = vmatmul.mubr.bf16.gmra.mrb[0].mxu0 %v575
        %v1038 = vpop.f32.mrb[0].mxu0
        %v1039 = vadd.f32 %v878, %v1038
        %v1040 = vpop.f32.mrb[0].mxu0
        %v1041 = vpop.f32.mrb[0].mxu0
        %v1042 = vadd.f32 %v881, %v1041
        %v1043 = vpop.f32.mrb[0].mxu0
        %1044 = vmatprep.mubr.bf16.mxu0 0
        %1045 = vmatmul.mubr.bf16.gmra.mrb[0].mxu0 %v578
        %v1046 = vpop.f32.mrb[0].mxu0
        %v1047 = vadd.f32 %v886, %v1046
        %v1048 = vpop.f32.mrb[0].mxu0
        %v1049 = vpop.f32.mrb[0].mxu0
        %v1050 = vadd.f32 %v889, %v1049
        %v1051 = vpop.f32.mrb[0].mxu0
        %1052 = vmatprep.mubr.bf16.mxu0 0
        %1053 = vmatmul.mubr.bf16.gmra.mrb[0].mxu0 %v581
        %v1054 = vpop.f32.mrb[0].mxu0
        %v1055 = vadd.f32 %v894, %v1054
        %v1056 = vpop.f32.mrb[0].mxu0
        %v1057 = vpop.f32.mrb[0].mxu0
        %v1058 = vadd.f32 %v897, %v1057
        %v1059 = vpop.f32.mrb[0].mxu0
        %1060 = vmatprep.mubr.bf16.mxu0 0
        %1061 = vmatmul.mubr.bf16.gmra.mrb[0].mxu0 %v584
        %v1062 = vpop.f32.mrb[0].mxu0
        %v1063 = vadd.f32 %v902, %v1062
        %v1064 = vpop.f32.mrb[0].mxu0
        %v1065 = vpop.f32.mrb[0].mxu0
        %v1066 = vadd.f32 %v905, %v1065
        %v1067 = vpop.f32.mrb[0].mxu0
        %1068 = vmatprep.mubr.bf16.mxu0 0
        %1069 = vmatmul.mubr.bf16.gmra.mrb[0].mxu0 %v587
        %v1070 = vpop.f32.mrb[0].mxu0
        %v1071 = vadd.f32 %v910, %v1070
        %v1072 = vpop.f32.mrb[0].mxu0
        %v1073 = vpop.f32.mrb[0].mxu0
        %v1074 = vadd.f32 %v913, %v1073
        %v1075 = vpop.f32.mrb[0].mxu0
        %1076 = vmatprep.mubr.bf16.mxu0 0
        %1077 = vmatmul.mubr.bf16.gmra.mrb[0].mxu0 %v590
        %v1078 = vpop.f32.mrb[0].mxu0
        %v1079 = vadd.f32 %v918, %v1078
        %v1080 = vpop.f32.mrb[0].mxu0
        %v1081 = vpop.f32.mrb[0].mxu0
        %v1082 = vadd.f32 %v921, %v1081
        %v1083 = vpop.f32.mrb[0].mxu0
        %1084 = vmatprep.mubr.bf16.mxu0 0
        %1085 = vmatmul.mubr.bf16.gmra.mrb[0].mxu0 %v593
        %v1086 = vpop.f32.mrb[0].mxu0
        %v1087 = vadd.f32 %v926, %v1086
        %v1088 = vpop.f32.mrb[0].mxu0
        %v1089 = vpop.f32.mrb[0].mxu0
        %v1090 = vadd.f32 %v929, %v1089
        %v1091 = vpop.f32.mrb[0].mxu0
        %1092 = vmatprep.mubr.bf16.mxu0 0
        %1093 = vmatmul.mubr.bf16.gmra.mrb[0].mxu0 %v596
        %v1094 = vpop.f32.mrb[0].mxu0
        %v1095 = vadd.f32 %v934, %v1094
        %v1096 = vpop.f32.mrb[0].mxu0
        %v1097 = vpop.f32.mrb[0].mxu0
        %v1098 = vadd.f32 %v937, %v1097
        %v1099 = vpop.f32.mrb[0].mxu0
        %1100 = vmatprep.mubr.bf16.mxu0 0
        %1101 = vmatmul.mubr.bf16.gmra.mrb[0].mxu0 %v599
        %v1102 = vpop.f32.mrb[0].mxu0
        %v1103 = vadd.f32 %v942, %v1102
        %v1104 = vpop.f32.mrb[0].mxu0
        %v1105 = vpop.f32.mrb[0].mxu0
        %v1106 = vadd.f32 %v945, %v1105
        %v1107 = vpop.f32.mrb[0].mxu0
        %1108 = vmatprep.mubr.bf16.mxu0 0
        %1109 = vmatmul.mubr.bf16.gmra.mrb[0].mxu0 %v602
        %v1110 = vpop.f32.mrb[0].mxu0
        %v1111 = vadd.f32 %v950, %v1110
        %v1112 = vpop.f32.mrb[0].mxu0
        %v1113 = vpop.f32.mrb[0].mxu0
        %v1114 = vadd.f32 %v953, %v1113
        %v1115 = vpop.f32.mrb[0].mxu0
        %1116 = vdwg.mxu0
        %v1117 = vtanh.pop %v991
        %v1118 = vtanh.pop %v994
        %v1119 = vtanh.pop %v999
        %v1120 = vtanh.pop %v1002
        %v1121 = vtanh.pop %v1007
        %v1122 = vtanh.pop %v1010
        %v1123 = vtanh.pop %v1015
        %v1124 = vtanh.pop %v1018
        %v1125 = vtanh.pop %v1023
        %v1126 = vtanh.pop %v1026
        %v1127 = vtanh.pop %v1031
        %v1128 = vtanh.pop %v1034
        %v1129 = vtanh.pop %v1039
        %v1130 = vtanh.pop %v1042
        %v1131 = vtanh.pop %v1047
        %v1132 = vtanh.pop %v1050
        %v1133 = vtanh.pop %v1055
        %v1134 = vtanh.pop %v1058
        %v1135 = vtanh.pop %v1063
        %v1136 = vtanh.pop %v1066
        %v1137 = vtanh.pop %v1071
        %v1138 = vtanh.pop %v1074
        %v1139 = vtanh.pop %v1079
        %v1140 = vtanh.pop %v1082
        %v1141 = vtanh.pop %v1087
        %v1142 = vtanh.pop %v1090
        %v1143 = vtanh.pop %v1095
        %v1144 = vtanh.pop %v1098
        %v1145 = vtanh.pop %v1103
        %v1146 = vtanh.pop %v1106
        %v1147 = vtanh.pop %v1111
        %v1148 = vtanh.pop %v1114
        %v1149 = vpack.c.bf16 %v1118, %v1117
        %v1150 = vpack.c.bf16 %v1120, %v1119
        %v1151 = vpack.c.bf16 %v1122, %v1121
        %v1152 = vpack.c.bf16 %v1124, %v1123
        %v1153 = vpack.c.bf16 %v1126, %v1125
        %v1154 = vpack.c.bf16 %v1128, %v1127
        %v1155 = vpack.c.bf16 %v1130, %v1129
        %v1156 = vpack.c.bf16 %v1132, %v1131
        %v1157 = vpack.c.bf16 %v1134, %v1133
        %v1158 = vpack.c.bf16 %v1136, %v1135
        %v1159 = vpack.c.bf16 %v1138, %v1137
        %v1160 = vpack.c.bf16 %v1140, %v1139
        %v1161 = vpack.c.bf16 %v1142, %v1141
        %v1162 = vpack.c.bf16 %v1144, %v1143
        %v1163 = vpack.c.bf16 %v1146, %v1145
        %v1164 = vpack.c.bf16 %v1148, %v1147
        %v1165 = vld [vmem:[#allocation7] sm:$0xff]
        %v1166 = vld [vmem:[#allocation7 + $0x8] sm:$0xf]
        %v1167 = vld [vmem:[#allocation7 + $0xc] sm:$0xff]
        %v1168 = vld [vmem:[#allocation7 + $0x14] sm:$0xf]
        %v1169 = vld [vmem:[#allocation7 + $0x18] sm:$0xff]
        %v1170 = vld [vmem:[#allocation7 + $0x20] sm:$0xf]
        %v1171 = vld [vmem:[#allocation7 + $0x24] sm:$0xff]
        %v1172 = vld [vmem:[#allocation7 + $0x2c] sm:$0xf]
        %v1173 = vld [vmem:[#allocation7 + $0x30] sm:$0xff]
        %v1174 = vld [vmem:[#allocation7 + $0x38] sm:$0xf]
        %v1175 = vld [vmem:[#allocation7 + $0x3c] sm:$0xff]
        %v1176 = vld [vmem:[#allocation7 + $0x44] sm:$0xf]
        %v1177 = vld [vmem:[#allocation7 + $0x48] sm:$0xff]
        %v1178 = vld [vmem:[#allocation7 + $0x50] sm:$0xf]
        %v1179 = vld [vmem:[#allocation7 + $0x54] sm:$0xff]
        %v1180 = vld [vmem:[#allocation7 + $0x5c] sm:$0xf]
        %v1181 = vld [vmem:[#allocation7 + $0x60] sm:$0xff]
        %v1182 = vld [vmem:[#allocation7 + $0x68] sm:$0xf]
        %v1183 = vld [vmem:[#allocation7 + $0x6c] sm:$0xff]
        %v1184 = vld [vmem:[#allocation7 + $0x74] sm:$0xf]
        %v1185 = vld [vmem:[#allocation7 + $0x78] sm:$0xff]
        %v1186 = vld [vmem:[#allocation7 + $0x80] sm:$0xf]
        %v1187 = vld [vmem:[#allocation7 + $0x84] sm:$0xff]
        %v1188 = vld [vmem:[#allocation7 + $0x8c] sm:$0xf]
        %v1189 = vld [vmem:[#allocation7 + $0x90] sm:$0xff]
        %v1190 = vld [vmem:[#allocation7 + $0x98] sm:$0xf]
        %v1191 = vld [vmem:[#allocation7 + $0x9c] sm:$0xff]
        %v1192 = vld [vmem:[#allocation7 + $0xa4] sm:$0xf]
        %v1193 = vld [vmem:[#allocation7 + $0xa8] sm:$0xff]
        %v1194 = vld [vmem:[#allocation7 + $0xb0] sm:$0xf]
        %v1195 = vld [vmem:[#allocation7 + $0xb4] sm:$0xff]
        %v1196 = vld [vmem:[#allocation7 + $0xbc] sm:$0xf]
        %v1197 = vld [vmem:[%s4] sm:$0x7]
        %v1199 = vlaneseq
        %v1200 = vshrl.u32 %v1199, 7
        %v1201 = vsub.s32 0, %v1200
        %v1202 = vrot.slane %v1197, %v1201
        %v1203 = vlaneseq
        %v1204 = vshrl.u32 %v1203, 7
        %v1205 = vsub.s32 1, %v1204
        %v1206 = vrot.slane %v1197, %v1205
        %v1207 = vlaneseq
        %v1208 = vshrl.u32 %v1207, 7
        %v1209 = vsub.s32 2, %v1208
        %v1210 = vrot.slane %v1197, %v1209
        %v1246 = vunpack.c.l.b16 %v1165
        %v1247 = vunpack.c.h.b16 %v1165
        %v1248 = vunpack.c.l.b16 %v1166
        %v1249 = vunpack.c.l.b16 %v1167
        %v1250 = vunpack.c.h.b16 %v1167
        %v1251 = vunpack.c.l.b16 %v1168
        %v1252 = vunpack.c.l.b16 %v1169
        %v1253 = vunpack.c.h.b16 %v1169
        %v1254 = vunpack.c.l.b16 %v1170
        %v1255 = vunpack.c.l.b16 %v1171
        %v1256 = vunpack.c.h.b16 %v1171
        %v1257 = vunpack.c.l.b16 %v1172
        %v1258 = vunpack.c.l.b16 %v1173
        %v1259 = vunpack.c.h.b16 %v1173
        %v1260 = vunpack.c.l.b16 %v1174
        %v1261 = vunpack.c.l.b16 %v1175
        %v1262 = vunpack.c.h.b16 %v1175
        %v1263 = vunpack.c.l.b16 %v1176
        %v1264 = vunpack.c.l.b16 %v1177
        %v1265 = vunpack.c.h.b16 %v1177
        %v1266 = vunpack.c.l.b16 %v1178
        %v1267 = vunpack.c.l.b16 %v1179
        %v1268 = vunpack.c.h.b16 %v1179
        %v1269 = vunpack.c.l.b16 %v1180
        %v1270 = vunpack.c.l.b16 %v1181
        %v1271 = vunpack.c.h.b16 %v1181
        %v1272 = vunpack.c.l.b16 %v1182
        %v1273 = vunpack.c.l.b16 %v1183
        %v1274 = vunpack.c.h.b16 %v1183
        %v1275 = vunpack.c.l.b16 %v1184
        %v1276 = vunpack.c.l.b16 %v1185
        %v1277 = vunpack.c.h.b16 %v1185
        %v1278 = vunpack.c.l.b16 %v1186
        %v1279 = vunpack.c.l.b16 %v1187
        %v1280 = vunpack.c.h.b16 %v1187
        %v1281 = vunpack.c.l.b16 %v1188
        %v1282 = vunpack.c.l.b16 %v1189
        %v1283 = vunpack.c.h.b16 %v1189
        %v1284 = vunpack.c.l.b16 %v1190
        %v1285 = vunpack.c.l.b16 %v1191
        %v1286 = vunpack.c.h.b16 %v1191
        %v1287 = vunpack.c.l.b16 %v1192
        %v1288 = vunpack.c.l.b16 %v1193
        %v1289 = vunpack.c.h.b16 %v1193
        %v1290 = vunpack.c.l.b16 %v1194
        %v1291 = vunpack.c.l.b16 %v1195
        %v1292 = vunpack.c.h.b16 %v1195
        %v1293 = vunpack.c.l.b16 %v1196
        %v1294 = vpack.c.b16 %v1249, %v1246
        %v1295 = vpack.c.b16 %v1250, %v1247
        %v1296 = vpack.c.b16 %v1251, %v1248
        %v1297 = vpack.c.b16 %v1255, %v1252
        %v1298 = vpack.c.b16 %v1256, %v1253
        %v1299 = vpack.c.b16 %v1257, %v1254
        %v1300 = vpack.c.b16 %v1261, %v1258
        %v1301 = vpack.c.b16 %v1262, %v1259
        %v1302 = vpack.c.b16 %v1263, %v1260
        %v1303 = vpack.c.b16 %v1267, %v1264
        %v1304 = vpack.c.b16 %v1268, %v1265
        %v1305 = vpack.c.b16 %v1269, %v1266
        %v1306 = vpack.c.b16 %v1273, %v1270
        %v1307 = vpack.c.b16 %v1274, %v1271
        %v1308 = vpack.c.b16 %v1275, %v1272
        %v1309 = vpack.c.b16 %v1279, %v1276
        %v1310 = vpack.c.b16 %v1280, %v1277
        %v1311 = vpack.c.b16 %v1281, %v1278
        %v1312 = vpack.c.b16 %v1285, %v1282
        %v1313 = vpack.c.b16 %v1286, %v1283
        %v1314 = vpack.c.b16 %v1287, %v1284
        %v1315 = vpack.c.b16 %v1291, %v1288
        %v1316 = vpack.c.b16 %v1292, %v1289
        %v1317 = vpack.c.b16 %v1293, %v1290
        %1342 = vmatprep.subr.bf16.mxu0 %v1295
        %1343 = vmatpush1.bf16.msra.mxu0 %v1294
        %1344 = vmatprep.subr.bf16.mxu0 %v1298
        %1345 = vmatpush1.bf16.msra.mxu0 %v1297
        %1346 = vmatprep.subr.bf16.mxu0 %v1301
        %1347 = vmatpush1.bf16.msra.mxu0 %v1300
        %1348 = vmatprep.subr.bf16.mxu0 %v1304
        %1349 = vmatpush1.bf16.msra.mxu0 %v1303
        %1350 = vmatprep.subr.bf16.mxu0 %v1307
        %1351 = vmatpush1.bf16.msra.mxu0 %v1306
        %1352 = vmatprep.subr.bf16.mxu0 %v1310
        %1353 = vmatpush1.bf16.msra.mxu0 %v1309
        %1354 = vmatprep.subr.bf16.mxu0 %v1313
        %1355 = vmatpush1.bf16.msra.mxu0 %v1312
        %1356 = vmatprep.subr.bf16.mxu0 %v1316
        %1357 = vmatpush1.bf16.msra.mxu0 %v1315
        %1358 = vmatprep.subr.bf16.mxu0 0
        %1359 = vmatpush1.bf16.msra.mxu0 0
        %1360 = vmatprep.subr.bf16.mxu0 0
        %1361 = vmatpush1.bf16.msra.mxu0 0
        %1362 = vmatprep.subr.bf16.mxu0 0
        %1363 = vmatpush1.bf16.msra.mxu0 0
        %1364 = vmatprep.subr.bf16.mxu0 0
        %1365 = vmatpush1.bf16.msra.mxu0 0
        %1366 = vmatprep.subr.bf16.mxu0 0
        %1367 = vmatpush1.bf16.msra.mxu0 0
        %1368 = vmatprep.subr.bf16.mxu0 0
        %1369 = vmatpush1.bf16.msra.mxu0 0
        %1370 = vmatprep.subr.bf16.mxu0 0
        %1371 = vmatpush1.bf16.msra.mxu0 0
        %1372 = vmatprep.subr.bf16.mxu0 0
        %1373 = vmatpush1.bf16.msra.mxu0 0
        %1374 = vmatprep.mubr.bf16.mxu0 0
        %1375 = vmatmul.mubr.bf16.gmra.mrb[0].mxu0 %v1149
        %v1376 = vpop.f32.mrb[0].mxu0
        %v1377 = vadd.f32 %v1202, %v1376
        %v1378 = vpop.f32.mrb[0].mxu0
        %v1379 = vadd.f32 %v1206, %v1378
        %v1380 = vpop.f32.mrb[0].mxu0
        %v1381 = vadd.f32 %v1202, %v1380
        %v1382 = vpop.f32.mrb[0].mxu0
        %v1383 = vadd.f32 %v1206, %v1382
        %1384 = vmatprep.mubr.bf16.mxu0 0
        %1385 = vmatmul.mubr.bf16.gmra.mrb[0].mxu0 %v1150
        %v1386 = vpop.f32.mrb[0].mxu0
        %v1387 = vadd.f32 %v1202, %v1386
        %v1388 = vpop.f32.mrb[0].mxu0
        %v1389 = vadd.f32 %v1206, %v1388
        %v1390 = vpop.f32.mrb[0].mxu0
        %v1391 = vadd.f32 %v1202, %v1390
        %v1392 = vpop.f32.mrb[0].mxu0
        %v1393 = vadd.f32 %v1206, %v1392
        %1394 = vmatprep.mubr.bf16.mxu0 0
        %1395 = vmatmul.mubr.bf16.gmra.mrb[0].mxu0 %v1151
        %v1396 = vpop.f32.mrb[0].mxu0
        %v1397 = vadd.f32 %v1202, %v1396
        %v1398 = vpop.f32.mrb[0].mxu0
        %v1399 = vadd.f32 %v1206, %v1398
        %v1400 = vpop.f32.mrb[0].mxu0
        %v1401 = vadd.f32 %v1202, %v1400
        %v1402 = vpop.f32.mrb[0].mxu0
        %v1403 = vadd.f32 %v1206, %v1402
        %1404 = vmatprep.mubr.bf16.mxu0 0
        %1405 = vmatmul.mubr.bf16.gmra.mrb[0].mxu0 %v1152
        %v1406 = vpop.f32.mrb[0].mxu0
        %v1407 = vadd.f32 %v1202, %v1406
        %v1408 = vpop.f32.mrb[0].mxu0
        %v1409 = vadd.f32 %v1206, %v1408
        %v1410 = vpop.f32.mrb[0].mxu0
        %v1411 = vadd.f32 %v1202, %v1410
        %v1412 = vpop.f32.mrb[0].mxu0
        %v1413 = vadd.f32 %v1206, %v1412
        %1414 = vmatprep.mubr.bf16.mxu0 0
        %1415 = vmatmul.mubr.bf16.gmra.mrb[0].mxu0 %v1153
        %v1416 = vpop.f32.mrb[0].mxu0
        %v1417 = vadd.f32 %v1202, %v1416
        %v1418 = vpop.f32.mrb[0].mxu0
        %v1419 = vadd.f32 %v1206, %v1418
        %v1420 = vpop.f32.mrb[0].mxu0
        %v1421 = vadd.f32 %v1202, %v1420
        %v1422 = vpop.f32.mrb[0].mxu0
        %v1423 = vadd.f32 %v1206, %v1422
        %1424 = vmatprep.mubr.bf16.mxu0 0
        %1425 = vmatmul.mubr.bf16.gmra.mrb[0].mxu0 %v1154
        %v1426 = vpop.f32.mrb[0].mxu0
        %v1427 = vadd.f32 %v1202, %v1426
        %v1428 = vpop.f32.mrb[0].mxu0
        %v1429 = vadd.f32 %v1206, %v1428
        %v1430 = vpop.f32.mrb[0].mxu0
        %v1431 = vadd.f32 %v1202, %v1430
        %v1432 = vpop.f32.mrb[0].mxu0
        %v1433 = vadd.f32 %v1206, %v1432
        %1434 = vmatprep.mubr.bf16.mxu0 0
        %1435 = vmatmul.mubr.bf16.gmra.mrb[0].mxu0 %v1155
        %v1436 = vpop.f32.mrb[0].mxu0
        %v1437 = vadd.f32 %v1202, %v1436
        %v1438 = vpop.f32.mrb[0].mxu0
        %v1439 = vadd.f32 %v1206, %v1438
        %v1440 = vpop.f32.mrb[0].mxu0
        %v1441 = vadd.f32 %v1202, %v1440
        %v1442 = vpop.f32.mrb[0].mxu0
        %v1443 = vadd.f32 %v1206, %v1442
        %1444 = vmatprep.mubr.bf16.mxu0 0
        %1445 = vmatmul.mubr.bf16.gmra.mrb[0].mxu0 %v1156
        %v1446 = vpop.f32.mrb[0].mxu0
        %v1447 = vadd.f32 %v1202, %v1446
        %v1448 = vpop.f32.mrb[0].mxu0
        %v1449 = vadd.f32 %v1206, %v1448
        %v1450 = vpop.f32.mrb[0].mxu0
        %v1451 = vadd.f32 %v1202, %v1450
        %v1452 = vpop.f32.mrb[0].mxu0
        %v1453 = vadd.f32 %v1206, %v1452
        %1454 = vmatprep.mubr.bf16.mxu0 0
        %1455 = vmatmul.mubr.bf16.gmra.mrb[0].mxu0 %v1157
        %v1456 = vpop.f32.mrb[0].mxu0
        %v1457 = vadd.f32 %v1202, %v1456
        %v1458 = vpop.f32.mrb[0].mxu0
        %v1459 = vadd.f32 %v1206, %v1458
        %v1460 = vpop.f32.mrb[0].mxu0
        %v1461 = vadd.f32 %v1202, %v1460
        %v1462 = vpop.f32.mrb[0].mxu0
        %v1463 = vadd.f32 %v1206, %v1462
        %1464 = vmatprep.mubr.bf16.mxu0 0
        %1465 = vmatmul.mubr.bf16.gmra.mrb[0].mxu0 %v1158
        %v1466 = vpop.f32.mrb[0].mxu0
        %v1467 = vadd.f32 %v1202, %v1466
        %v1468 = vpop.f32.mrb[0].mxu0
        %v1469 = vadd.f32 %v1206, %v1468
        %v1470 = vpop.f32.mrb[0].mxu0
        %v1471 = vadd.f32 %v1202, %v1470
        %v1472 = vpop.f32.mrb[0].mxu0
        %v1473 = vadd.f32 %v1206, %v1472
        %1474 = vmatprep.mubr.bf16.mxu0 0
        %1475 = vmatmul.mubr.bf16.gmra.mrb[0].mxu0 %v1159
        %v1476 = vpop.f32.mrb[0].mxu0
        %v1477 = vadd.f32 %v1202, %v1476
        %v1478 = vpop.f32.mrb[0].mxu0
        %v1479 = vadd.f32 %v1206, %v1478
        %v1480 = vpop.f32.mrb[0].mxu0
        %v1481 = vadd.f32 %v1202, %v1480
        %v1482 = vpop.f32.mrb[0].mxu0
        %v1483 = vadd.f32 %v1206, %v1482
        %1484 = vmatprep.mubr.bf16.mxu0 0
        %1485 = vmatmul.mubr.bf16.gmra.mrb[0].mxu0 %v1160
        %v1486 = vpop.f32.mrb[0].mxu0
        %v1487 = vadd.f32 %v1202, %v1486
        %v1488 = vpop.f32.mrb[0].mxu0
        %v1489 = vadd.f32 %v1206, %v1488
        %v1490 = vpop.f32.mrb[0].mxu0
        %v1491 = vadd.f32 %v1202, %v1490
        %v1492 = vpop.f32.mrb[0].mxu0
        %v1493 = vadd.f32 %v1206, %v1492
        %1494 = vmatprep.mubr.bf16.mxu0 0
        %1495 = vmatmul.mubr.bf16.gmra.mrb[0].mxu0 %v1161
        %v1496 = vpop.f32.mrb[0].mxu0
        %v1497 = vadd.f32 %v1202, %v1496
        %v1498 = vpop.f32.mrb[0].mxu0
        %v1499 = vadd.f32 %v1206, %v1498
        %v1500 = vpop.f32.mrb[0].mxu0
        %v1501 = vadd.f32 %v1202, %v1500
        %v1502 = vpop.f32.mrb[0].mxu0
        %v1503 = vadd.f32 %v1206, %v1502
        %1504 = vmatprep.mubr.bf16.mxu0 0
        %1505 = vmatmul.mubr.bf16.gmra.mrb[0].mxu0 %v1162
        %v1506 = vpop.f32.mrb[0].mxu0
        %v1507 = vadd.f32 %v1202, %v1506
        %v1508 = vpop.f32.mrb[0].mxu0
        %v1509 = vadd.f32 %v1206, %v1508
        %v1510 = vpop.f32.mrb[0].mxu0
        %v1511 = vadd.f32 %v1202, %v1510
        %v1512 = vpop.f32.mrb[0].mxu0
        %v1513 = vadd.f32 %v1206, %v1512
        %1514 = vmatprep.mubr.bf16.mxu0 0
        %1515 = vmatmul.mubr.bf16.gmra.mrb[0].mxu0 %v1163
        %v1516 = vpop.f32.mrb[0].mxu0
        %v1517 = vadd.f32 %v1202, %v1516
        %v1518 = vpop.f32.mrb[0].mxu0
        %v1519 = vadd.f32 %v1206, %v1518
        %v1520 = vpop.f32.mrb[0].mxu0
        %v1521 = vadd.f32 %v1202, %v1520
        %v1522 = vpop.f32.mrb[0].mxu0
        %v1523 = vadd.f32 %v1206, %v1522
        %1524 = vmatprep.mubr.bf16.mxu0 0
        %1525 = vmatmul.mubr.bf16.gmra.mrb[0].mxu0 %v1164
        %v1526 = vpop.f32.mrb[0].mxu0
        %v1527 = vadd.f32 %v1202, %v1526
        %v1528 = vpop.f32.mrb[0].mxu0
        %v1529 = vadd.f32 %v1206, %v1528
        %v1530 = vpop.f32.mrb[0].mxu0
        %v1531 = vadd.f32 %v1202, %v1530
        %v1532 = vpop.f32.mrb[0].mxu0
        %v1533 = vadd.f32 %v1206, %v1532
        %1534 = vdwg.mxu0
        %1535 = vmatprep.subr.bf16.mxu0 0
        %1536 = vmatpush1.bf16.msra.mxu0 %v1296
        %1537 = vmatprep.subr.bf16.mxu0 0
        %1538 = vmatpush1.bf16.msra.mxu0 %v1299
        %1539 = vmatprep.subr.bf16.mxu0 0
        %1540 = vmatpush1.bf16.msra.mxu0 %v1302
        %1541 = vmatprep.subr.bf16.mxu0 0
        %1542 = vmatpush1.bf16.msra.mxu0 %v1305
        %1543 = vmatprep.subr.bf16.mxu0 0
        %1544 = vmatpush1.bf16.msra.mxu0 %v1308
        %1545 = vmatprep.subr.bf16.mxu0 0
        %1546 = vmatpush1.bf16.msra.mxu0 %v1311
        %1547 = vmatprep.subr.bf16.mxu0 0
        %1548 = vmatpush1.bf16.msra.mxu0 %v1314
        %1549 = vmatprep.subr.bf16.mxu0 0
        %1550 = vmatpush1.bf16.msra.mxu0 %v1317
        %1551 = vmatprep.subr.bf16.mxu0 0
        %1552 = vmatpush1.bf16.msra.mxu0 0
        %1553 = vmatprep.subr.bf16.mxu0 0
        %1554 = vmatpush1.bf16.msra.mxu0 0
        %1555 = vmatprep.subr.bf16.mxu0 0
        %1556 = vmatpush1.bf16.msra.mxu0 0
        %1557 = vmatprep.subr.bf16.mxu0 0
        %1558 = vmatpush1.bf16.msra.mxu0 0
        %1559 = vmatprep.subr.bf16.mxu0 0
        %1560 = vmatpush1.bf16.msra.mxu0 0
        %1561 = vmatprep.subr.bf16.mxu0 0
        %1562 = vmatpush1.bf16.msra.mxu0 0
        %1563 = vmatprep.subr.bf16.mxu0 0
        %1564 = vmatpush1.bf16.msra.mxu0 0
        %1565 = vmatprep.subr.bf16.mxu0 0
        %1566 = vmatpush1.bf16.msra.mxu0 0
        %1567 = vmatprep.mubr.bf16.mxu0 0
        %1568 = vmatmul.mubr.bf16.gmra.mrb[0].mxu0 %v1149
        %v1569 = vpop.f32.mrb[0].mxu0
        %v1570 = vadd.f32 %v1210, %v1569
        %v1571 = vpop.f32.mrb[0].mxu0
        %v1572 = vpop.f32.mrb[0].mxu0
        %v1573 = vadd.f32 %v1210, %v1572
        %v1574 = vpop.f32.mrb[0].mxu0
        %1575 = vmatprep.mubr.bf16.mxu0 0
        %1576 = vmatmul.mubr.bf16.gmra.mrb[0].mxu0 %v1150
        %v1577 = vpop.f32.mrb[0].mxu0
        %v1578 = vadd.f32 %v1210, %v1577
        %v1579 = vpop.f32.mrb[0].mxu0
        %v1580 = vpop.f32.mrb[0].mxu0
        %v1581 = vadd.f32 %v1210, %v1580
        %v1582 = vpop.f32.mrb[0].mxu0
        %1583 = vmatprep.mubr.bf16.mxu0 0
        %1584 = vmatmul.mubr.bf16.gmra.mrb[0].mxu0 %v1151
        %v1585 = vpop.f32.mrb[0].mxu0
        %v1586 = vadd.f32 %v1210, %v1585
        %v1587 = vpop.f32.mrb[0].mxu0
        %v1588 = vpop.f32.mrb[0].mxu0
        %v1589 = vadd.f32 %v1210, %v1588
        %v1590 = vpop.f32.mrb[0].mxu0
        %1591 = vmatprep.mubr.bf16.mxu0 0
        %1592 = vmatmul.mubr.bf16.gmra.mrb[0].mxu0 %v1152
        %v1593 = vpop.f32.mrb[0].mxu0
        %v1594 = vadd.f32 %v1210, %v1593
        %v1595 = vpop.f32.mrb[0].mxu0
        %v1596 = vpop.f32.mrb[0].mxu0
        %v1597 = vadd.f32 %v1210, %v1596
        %v1598 = vpop.f32.mrb[0].mxu0
        %1599 = vmatprep.mubr.bf16.mxu0 0
        %1600 = vmatmul.mubr.bf16.gmra.mrb[0].mxu0 %v1153
        %v1601 = vpop.f32.mrb[0].mxu0
        %v1602 = vadd.f32 %v1210, %v1601
        %v1603 = vpop.f32.mrb[0].mxu0
        %v1604 = vpop.f32.mrb[0].mxu0
        %v1605 = vadd.f32 %v1210, %v1604
        %v1606 = vpop.f32.mrb[0].mxu0
        %1607 = vmatprep.mubr.bf16.mxu0 0
        %1608 = vmatmul.mubr.bf16.gmra.mrb[0].mxu0 %v1154
        %v1609 = vpop.f32.mrb[0].mxu0
        %v1610 = vadd.f32 %v1210, %v1609
        %v1611 = vpop.f32.mrb[0].mxu0
        %v1612 = vpop.f32.mrb[0].mxu0
        %v1613 = vadd.f32 %v1210, %v1612
        %v1614 = vpop.f32.mrb[0].mxu0
        %1615 = vmatprep.mubr.bf16.mxu0 0
        %1616 = vmatmul.mubr.bf16.gmra.mrb[0].mxu0 %v1155
        %v1617 = vpop.f32.mrb[0].mxu0
        %v1618 = vadd.f32 %v1210, %v1617
        %v1619 = vpop.f32.mrb[0].mxu0
        %v1620 = vpop.f32.mrb[0].mxu0
        %v1621 = vadd.f32 %v1210, %v1620
        %v1622 = vpop.f32.mrb[0].mxu0
        %1623 = vmatprep.mubr.bf16.mxu0 0
        %1624 = vmatmul.mubr.bf16.gmra.mrb[0].mxu0 %v1156
        %v1625 = vpop.f32.mrb[0].mxu0
        %v1626 = vadd.f32 %v1210, %v1625
        %v1627 = vpop.f32.mrb[0].mxu0
        %v1628 = vpop.f32.mrb[0].mxu0
        %v1629 = vadd.f32 %v1210, %v1628
        %v1630 = vpop.f32.mrb[0].mxu0
        %1631 = vmatprep.mubr.bf16.mxu0 0
        %1632 = vmatmul.mubr.bf16.gmra.mrb[0].mxu0 %v1157
        %v1633 = vpop.f32.mrb[0].mxu0
        %v1634 = vadd.f32 %v1210, %v1633
        %v1635 = vpop.f32.mrb[0].mxu0
        %v1636 = vpop.f32.mrb[0].mxu0
        %v1637 = vadd.f32 %v1210, %v1636
        %v1638 = vpop.f32.mrb[0].mxu0
        %1639 = vmatprep.mubr.bf16.mxu0 0
        %1640 = vmatmul.mubr.bf16.gmra.mrb[0].mxu0 %v1158
        %v1641 = vpop.f32.mrb[0].mxu0
        %v1642 = vadd.f32 %v1210, %v1641
        %v1643 = vpop.f32.mrb[0].mxu0
        %v1644 = vpop.f32.mrb[0].mxu0
        %v1645 = vadd.f32 %v1210, %v1644
        %v1646 = vpop.f32.mrb[0].mxu0
        %1647 = vmatprep.mubr.bf16.mxu0 0
        %1648 = vmatmul.mubr.bf16.gmra.mrb[0].mxu0 %v1159
        %v1649 = vpop.f32.mrb[0].mxu0
        %v1650 = vadd.f32 %v1210, %v1649
        %v1651 = vpop.f32.mrb[0].mxu0
        %v1652 = vpop.f32.mrb[0].mxu0
        %v1653 = vadd.f32 %v1210, %v1652
        %v1654 = vpop.f32.mrb[0].mxu0
        %1655 = vmatprep.mubr.bf16.mxu0 0
        %1656 = vmatmul.mubr.bf16.gmra.mrb[0].mxu0 %v1160
        %v1657 = vpop.f32.mrb[0].mxu0
        %v1658 = vadd.f32 %v1210, %v1657
        %v1659 = vpop.f32.mrb[0].mxu0
        %v1660 = vpop.f32.mrb[0].mxu0
        %v1661 = vadd.f32 %v1210, %v1660
        %v1662 = vpop.f32.mrb[0].mxu0
        %1663 = vmatprep.mubr.bf16.mxu0 0
        %1664 = vmatmul.mubr.bf16.gmra.mrb[0].mxu0 %v1161
        %v1665 = vpop.f32.mrb[0].mxu0
        %v1666 = vadd.f32 %v1210, %v1665
        %v1667 = vpop.f32.mrb[0].mxu0
        %v1668 = vpop.f32.mrb[0].mxu0
        %v1669 = vadd.f32 %v1210, %v1668
        %v1670 = vpop.f32.mrb[0].mxu0
        %1671 = vmatprep.mubr.bf16.mxu0 0
        %1672 = vmatmul.mubr.bf16.gmra.mrb[0].mxu0 %v1162
        %v1673 = vpop.f32.mrb[0].mxu0
        %v1674 = vadd.f32 %v1210, %v1673
        %v1675 = vpop.f32.mrb[0].mxu0
        %v1676 = vpop.f32.mrb[0].mxu0
        %v1677 = vadd.f32 %v1210, %v1676
        %v1678 = vpop.f32.mrb[0].mxu0
        %1679 = vmatprep.mubr.bf16.mxu0 0
        %1680 = vmatmul.mubr.bf16.gmra.mrb[0].mxu0 %v1163
        %v1681 = vpop.f32.mrb[0].mxu0
        %v1682 = vadd.f32 %v1210, %v1681
        %v1683 = vpop.f32.mrb[0].mxu0
        %v1684 = vpop.f32.mrb[0].mxu0
        %v1685 = vadd.f32 %v1210, %v1684
        %v1686 = vpop.f32.mrb[0].mxu0
        %1687 = vmatprep.mubr.bf16.mxu0 0
        %1688 = vmatmul.mubr.bf16.gmra.mrb[0].mxu0 %v1164
        %v1689 = vpop.f32.mrb[0].mxu0
        %v1690 = vadd.f32 %v1210, %v1689
        %v1691 = vpop.f32.mrb[0].mxu0
        %v1692 = vpop.f32.mrb[0].mxu0
        %v1693 = vadd.f32 %v1210, %v1692
        %v1694 = vpop.f32.mrb[0].mxu0
        %1695 = vdwg.mxu0
        %v1696 = vxor.u32 %v1377, 2147483648
        %v1697 = vxor.u32 %v1379, 2147483648
        %v1698 = vxor.u32 %v1570, 2147483648
        %v1699 = vxor.u32 %v1381, 2147483648
        %v1700 = vxor.u32 %v1383, 2147483648
        %v1701 = vxor.u32 %v1573, 2147483648
        %v1702 = vxor.u32 %v1387, 2147483648
        %v1703 = vxor.u32 %v1389, 2147483648
        %v1704 = vxor.u32 %v1578, 2147483648
        %v1705 = vxor.u32 %v1391, 2147483648
        %v1706 = vxor.u32 %v1393, 2147483648
        %v1707 = vxor.u32 %v1581, 2147483648
        %v1708 = vxor.u32 %v1397, 2147483648
        %v1709 = vxor.u32 %v1399, 2147483648
        %v1710 = vxor.u32 %v1586, 2147483648
        %v1711 = vxor.u32 %v1401, 2147483648
        %v1712 = vxor.u32 %v1403, 2147483648
        %v1713 = vxor.u32 %v1589, 2147483648
        %v1714 = vxor.u32 %v1407, 2147483648
        %v1715 = vxor.u32 %v1409, 2147483648
        %v1716 = vxor.u32 %v1594, 2147483648
        %v1717 = vxor.u32 %v1411, 2147483648
        %v1718 = vxor.u32 %v1413, 2147483648
        %v1719 = vxor.u32 %v1597, 2147483648
        %v1720 = vxor.u32 %v1417, 2147483648
        %v1721 = vxor.u32 %v1419, 2147483648
        %v1722 = vxor.u32 %v1602, 2147483648
        %v1723 = vxor.u32 %v1421, 2147483648
        %v1724 = vxor.u32 %v1423, 2147483648
        %v1725 = vxor.u32 %v1605, 2147483648
        %v1726 = vxor.u32 %v1427, 2147483648
        %v1727 = vxor.u32 %v1429, 2147483648
        %v1728 = vxor.u32 %v1610, 2147483648
        %v1729 = vxor.u32 %v1431, 2147483648
        %v1730 = vxor.u32 %v1433, 2147483648
        %v1731 = vxor.u32 %v1613, 2147483648
        %v1732 = vxor.u32 %v1437, 2147483648
        %v1733 = vxor.u32 %v1439, 2147483648
        %v1734 = vxor.u32 %v1618, 2147483648
        %v1735 = vxor.u32 %v1441, 2147483648
        %v1736 = vxor.u32 %v1443, 2147483648
        %v1737 = vxor.u32 %v1621, 2147483648
        %v1738 = vxor.u32 %v1447, 2147483648
        %v1739 = vxor.u32 %v1449, 2147483648
        %v1740 = vxor.u32 %v1626, 2147483648
        %v1741 = vxor.u32 %v1451, 2147483648
        %v1742 = vxor.u32 %v1453, 2147483648
        %v1743 = vxor.u32 %v1629, 2147483648
        %v1744 = vxor.u32 %v1457, 2147483648
        %v1745 = vxor.u32 %v1459, 2147483648
        %v1746 = vxor.u32 %v1634, 2147483648
        %v1747 = vxor.u32 %v1461, 2147483648
        %v1748 = vxor.u32 %v1463, 2147483648
        %v1749 = vxor.u32 %v1637, 2147483648
        %v1750 = vxor.u32 %v1467, 2147483648
        %v1751 = vxor.u32 %v1469, 2147483648
        %v1752 = vxor.u32 %v1642, 2147483648
        %v1753 = vxor.u32 %v1471, 2147483648
        %v1754 = vxor.u32 %v1473, 2147483648
        %v1755 = vxor.u32 %v1645, 2147483648
        %v1756 = vxor.u32 %v1477, 2147483648
        %v1757 = vxor.u32 %v1479, 2147483648
        %v1758 = vxor.u32 %v1650, 2147483648
        %v1759 = vxor.u32 %v1481, 2147483648
        %v1760 = vxor.u32 %v1483, 2147483648
        %v1761 = vxor.u32 %v1653, 2147483648
        %v1762 = vxor.u32 %v1487, 2147483648
        %v1763 = vxor.u32 %v1489, 2147483648
        %v1764 = vxor.u32 %v1658, 2147483648
        %v1765 = vxor.u32 %v1491, 2147483648
        %v1766 = vxor.u32 %v1493, 2147483648
        %v1767 = vxor.u32 %v1661, 2147483648
        %v1768 = vxor.u32 %v1497, 2147483648
        %v1769 = vxor.u32 %v1499, 2147483648
        %v1770 = vxor.u32 %v1666, 2147483648
        %v1771 = vxor.u32 %v1501, 2147483648
        %v1772 = vxor.u32 %v1503, 2147483648
        %v1773 = vxor.u32 %v1669, 2147483648
        %v1774 = vxor.u32 %v1507, 2147483648
        %v1775 = vxor.u32 %v1509, 2147483648
        %v1776 = vxor.u32 %v1674, 2147483648
        %v1777 = vxor.u32 %v1511, 2147483648
        %v1778 = vxor.u32 %v1513, 2147483648
        %v1779 = vxor.u32 %v1677, 2147483648
        %v1780 = vxor.u32 %v1517, 2147483648
        %v1781 = vxor.u32 %v1519, 2147483648
        %v1782 = vxor.u32 %v1682, 2147483648
        %v1783 = vxor.u32 %v1521, 2147483648
        %v1784 = vxor.u32 %v1523, 2147483648
        %v1785 = vxor.u32 %v1685, 2147483648
        %v1786 = vxor.u32 %v1527, 2147483648
        %v1787 = vxor.u32 %v1529, 2147483648
        %v1788 = vxor.u32 %v1690, 2147483648
        %v1789 = vxor.u32 %v1531, 2147483648
        %v1790 = vxor.u32 %v1533, 2147483648
        %v1791 = vxor.u32 %v1693, 2147483648
        %v1792 = vmul.f32 %v1696, 1.442695
        %v1793 = vpow.pop %v1792
        %v1794 = vmul.f32 %v1697, 1.442695
        %v1795 = vpow.pop %v1794
        %v1796 = vmul.f32 %v1698, 1.442695
        %v1797 = vpow.pop %v1796
        %v1798 = vmul.f32 %v1699, 1.442695
        %v1799 = vpow.pop %v1798
        %v1800 = vmul.f32 %v1700, 1.442695
        %v1801 = vpow.pop %v1800
        %v1802 = vmul.f32 %v1701, 1.442695
        %v1803 = vpow.pop %v1802
        %v1804 = vmul.f32 %v1702, 1.442695
        %v1805 = vpow.pop %v1804
        %v1806 = vmul.f32 %v1703, 1.442695
        %v1807 = vpow.pop %v1806
        %v1808 = vmul.f32 %v1704, 1.442695
        %v1809 = vpow.pop %v1808
        %v1810 = vmul.f32 %v1705, 1.442695
        %v1811 = vpow.pop %v1810
        %v1812 = vmul.f32 %v1706, 1.442695
        %v1813 = vpow.pop %v1812
        %v1814 = vmul.f32 %v1707, 1.442695
        %v1815 = vpow.pop %v1814
        %v1816 = vmul.f32 %v1708, 1.442695
        %v1817 = vpow.pop %v1816
        %v1818 = vmul.f32 %v1709, 1.442695
        %v1819 = vpow.pop %v1818
        %v1820 = vmul.f32 %v1710, 1.442695
        %v1821 = vpow.pop %v1820
        %v1822 = vmul.f32 %v1711, 1.442695
        %v1823 = vpow.pop %v1822
        %v1824 = vmul.f32 %v1712, 1.442695
        %v1825 = vpow.pop %v1824
        %v1826 = vmul.f32 %v1713, 1.442695
        %v1827 = vpow.pop %v1826
        %v1828 = vmul.f32 %v1714, 1.442695
        %v1829 = vpow.pop %v1828
        %v1830 = vmul.f32 %v1715, 1.442695
        %v1831 = vpow.pop %v1830
        %v1832 = vmul.f32 %v1716, 1.442695
        %v1833 = vpow.pop %v1832
        %v1834 = vmul.f32 %v1717, 1.442695
        %v1835 = vpow.pop %v1834
        %v1836 = vmul.f32 %v1718, 1.442695
        %v1837 = vpow.pop %v1836
        %v1838 = vmul.f32 %v1719, 1.442695
        %v1839 = vpow.pop %v1838
        %v1840 = vmul.f32 %v1720, 1.442695
        %v1841 = vpow.pop %v1840
        %v1842 = vmul.f32 %v1721, 1.442695
        %v1843 = vpow.pop %v1842
        %v1844 = vmul.f32 %v1722, 1.442695
        %v1845 = vpow.pop %v1844
        %v1846 = vmul.f32 %v1723, 1.442695
        %v1847 = vpow.pop %v1846
        %v1848 = vmul.f32 %v1724, 1.442695
        %v1849 = vpow.pop %v1848
        %v1850 = vmul.f32 %v1725, 1.442695
        %v1851 = vpow.pop %v1850
        %v1852 = vmul.f32 %v1726, 1.442695
        %v1853 = vpow.pop %v1852
        %v1854 = vmul.f32 %v1727, 1.442695
        %v1855 = vpow.pop %v1854
        %v1856 = vmul.f32 %v1728, 1.442695
        %v1857 = vpow.pop %v1856
        %v1858 = vmul.f32 %v1729, 1.442695
        %v1859 = vpow.pop %v1858
        %v1860 = vmul.f32 %v1730, 1.442695
        %v1861 = vpow.pop %v1860
        %v1862 = vmul.f32 %v1731, 1.442695
        %v1863 = vpow.pop %v1862
        %v1864 = vmul.f32 %v1732, 1.442695
        %v1865 = vpow.pop %v1864
        %v1866 = vmul.f32 %v1733, 1.442695
        %v1867 = vpow.pop %v1866
        %v1868 = vmul.f32 %v1734, 1.442695
        %v1869 = vpow.pop %v1868
        %v1870 = vmul.f32 %v1735, 1.442695
        %v1871 = vpow.pop %v1870
        %v1872 = vmul.f32 %v1736, 1.442695
        %v1873 = vpow.pop %v1872
        %v1874 = vmul.f32 %v1737, 1.442695
        %v1875 = vpow.pop %v1874
        %v1876 = vmul.f32 %v1738, 1.442695
        %v1877 = vpow.pop %v1876
        %v1878 = vmul.f32 %v1739, 1.442695
        %v1879 = vpow.pop %v1878
        %v1880 = vmul.f32 %v1740, 1.442695
        %v1881 = vpow.pop %v1880
        %v1882 = vmul.f32 %v1741, 1.442695
        %v1883 = vpow.pop %v1882
        %v1884 = vmul.f32 %v1742, 1.442695
        %v1885 = vpow.pop %v1884
        %v1886 = vmul.f32 %v1743, 1.442695
        %v1887 = vpow.pop %v1886
        %v1888 = vmul.f32 %v1744, 1.442695
        %v1889 = vpow.pop %v1888
        %v1890 = vmul.f32 %v1745, 1.442695
        %v1891 = vpow.pop %v1890
        %v1892 = vmul.f32 %v1746, 1.442695
        %v1893 = vpow.pop %v1892
        %v1894 = vmul.f32 %v1747, 1.442695
        %v1895 = vpow.pop %v1894
        %v1896 = vmul.f32 %v1748, 1.442695
        %v1897 = vpow.pop %v1896
        %v1898 = vmul.f32 %v1749, 1.442695
        %v1899 = vpow.pop %v1898
        %v1900 = vmul.f32 %v1750, 1.442695
        %v1901 = vpow.pop %v1900
        %v1902 = vmul.f32 %v1751, 1.442695
        %v1903 = vpow.pop %v1902
        %v1904 = vmul.f32 %v1752, 1.442695
        %v1905 = vpow.pop %v1904
        %v1906 = vmul.f32 %v1753, 1.442695
        %v1907 = vpow.pop %v1906
        %v1908 = vmul.f32 %v1754, 1.442695
        %v1909 = vpow.pop %v1908
        %v1910 = vmul.f32 %v1755, 1.442695
        %v1911 = vpow.pop %v1910
        %v1912 = vmul.f32 %v1756, 1.442695
        %v1913 = vpow.pop %v1912
        %v1914 = vmul.f32 %v1757, 1.442695
        %v1915 = vpow.pop %v1914
        %v1916 = vmul.f32 %v1758, 1.442695
        %v1917 = vpow.pop %v1916
        %v1918 = vmul.f32 %v1759, 1.442695
        %v1919 = vpow.pop %v1918
        %v1920 = vmul.f32 %v1760, 1.442695
        %v1921 = vpow.pop %v1920
        %v1922 = vmul.f32 %v1761, 1.442695
        %v1923 = vpow.pop %v1922
        %v1924 = vmul.f32 %v1762, 1.442695
        %v1925 = vpow.pop %v1924
        %v1926 = vmul.f32 %v1763, 1.442695
        %v1927 = vpow.pop %v1926
        %v1928 = vmul.f32 %v1764, 1.442695
        %v1929 = vpow.pop %v1928
        %v1930 = vmul.f32 %v1765, 1.442695
        %v1931 = vpow.pop %v1930
        %v1932 = vmul.f32 %v1766, 1.442695
        %v1933 = vpow.pop %v1932
        %v1934 = vmul.f32 %v1767, 1.442695
        %v1935 = vpow.pop %v1934
        %v1936 = vmul.f32 %v1768, 1.442695
        %v1937 = vpow.pop %v1936
        %v1938 = vmul.f32 %v1769, 1.442695
        %v1939 = vpow.pop %v1938
        %v1940 = vmul.f32 %v1770, 1.442695
        %v1941 = vpow.pop %v1940
        %v1942 = vmul.f32 %v1771, 1.442695
        %v1943 = vpow.pop %v1942
        %v1944 = vmul.f32 %v1772, 1.442695
        %v1945 = vpow.pop %v1944
        %v1946 = vmul.f32 %v1773, 1.442695
        %v1947 = vpow.pop %v1946
        %v1948 = vmul.f32 %v1774, 1.442695
        %v1949 = vpow.pop %v1948
        %v1950 = vmul.f32 %v1775, 1.442695
        %v1951 = vpow.pop %v1950
        %v1952 = vmul.f32 %v1776, 1.442695
        %v1953 = vpow.pop %v1952
        %v1954 = vmul.f32 %v1777, 1.442695
        %v1955 = vpow.pop %v1954
        %v1956 = vmul.f32 %v1778, 1.442695
        %v1957 = vpow.pop %v1956
        %v1958 = vmul.f32 %v1779, 1.442695
        %v1959 = vpow.pop %v1958
        %v1960 = vmul.f32 %v1780, 1.442695
        %v1961 = vpow.pop %v1960
        %v1962 = vmul.f32 %v1781, 1.442695
        %v1963 = vpow.pop %v1962
        %v1964 = vmul.f32 %v1782, 1.442695
        %v1965 = vpow.pop %v1964
        %v1966 = vmul.f32 %v1783, 1.442695
        %v1967 = vpow.pop %v1966
        %v1968 = vmul.f32 %v1784, 1.442695
        %v1969 = vpow.pop %v1968
        %v1970 = vmul.f32 %v1785, 1.442695
        %v1971 = vpow.pop %v1970
        %v1972 = vmul.f32 %v1786, 1.442695
        %v1973 = vpow.pop %v1972
        %v1974 = vmul.f32 %v1787, 1.442695
        %v1975 = vpow.pop %v1974
        %v1976 = vmul.f32 %v1788, 1.442695
        %v1977 = vpow.pop %v1976
        %v1978 = vmul.f32 %v1789, 1.442695
        %v1979 = vpow.pop %v1978
        %v1980 = vmul.f32 %v1790, 1.442695
        %v1981 = vpow.pop %v1980
        %v1982 = vmul.f32 %v1791, 1.442695
        %v1983 = vpow.pop %v1982
        %v1984 = vadd.f32 %v1793, 1.0
        %v1985 = vadd.f32 %v1795, 1.0
        %v1986 = vadd.f32 %v1797, 1.0
        %v1987 = vadd.f32 %v1799, 1.0
        %v1988 = vadd.f32 %v1801, 1.0
        %v1989 = vadd.f32 %v1803, 1.0
        %v1990 = vadd.f32 %v1805, 1.0
        %v1991 = vadd.f32 %v1807, 1.0
        %v1992 = vadd.f32 %v1809, 1.0
        %v1993 = vadd.f32 %v1811, 1.0
        %v1994 = vadd.f32 %v1813, 1.0
        %v1995 = vadd.f32 %v1815, 1.0
        %v1996 = vadd.f32 %v1817, 1.0
        %v1997 = vadd.f32 %v1819, 1.0
        %v1998 = vadd.f32 %v1821, 1.0
        %v1999 = vadd.f32 %v1823, 1.0
        %v2000 = vadd.f32 %v1825, 1.0
        %v2001 = vadd.f32 %v1827, 1.0
        %v2002 = vadd.f32 %v1829, 1.0
        %v2003 = vadd.f32 %v1831, 1.0
        %v2004 = vadd.f32 %v1833, 1.0
        %v2005 = vadd.f32 %v1835, 1.0
        %v2006 = vadd.f32 %v1837, 1.0
        %v2007 = vadd.f32 %v1839, 1.0
        %v2008 = vadd.f32 %v1841, 1.0
        %v2009 = vadd.f32 %v1843, 1.0
        %v2010 = vadd.f32 %v1845, 1.0
        %v2011 = vadd.f32 %v1847, 1.0
        %v2012 = vadd.f32 %v1849, 1.0
        %v2013 = vadd.f32 %v1851, 1.0
        %v2014 = vadd.f32 %v1853, 1.0
        %v2015 = vadd.f32 %v1855, 1.0
        %v2016 = vadd.f32 %v1857, 1.0
        %v2017 = vadd.f32 %v1859, 1.0
        %v2018 = vadd.f32 %v1861, 1.0
        %v2019 = vadd.f32 %v1863, 1.0
        %v2020 = vadd.f32 %v1865, 1.0
        %v2021 = vadd.f32 %v1867, 1.0
        %v2022 = vadd.f32 %v1869, 1.0
        %v2023 = vadd.f32 %v1871, 1.0
        %v2024 = vadd.f32 %v1873, 1.0
        %v2025 = vadd.f32 %v1875, 1.0
        %v2026 = vadd.f32 %v1877, 1.0
        %v2027 = vadd.f32 %v1879, 1.0
        %v2028 = vadd.f32 %v1881, 1.0
        %v2029 = vadd.f32 %v1883, 1.0
        %v2030 = vadd.f32 %v1885, 1.0
        %v2031 = vadd.f32 %v1887, 1.0
        %v2032 = vadd.f32 %v1889, 1.0
        %v2033 = vadd.f32 %v1891, 1.0
        %v2034 = vadd.f32 %v1893, 1.0
        %v2035 = vadd.f32 %v1895, 1.0
        %v2036 = vadd.f32 %v1897, 1.0
        %v2037 = vadd.f32 %v1899, 1.0
        %v2038 = vadd.f32 %v1901, 1.0
        %v2039 = vadd.f32 %v1903, 1.0
        %v2040 = vadd.f32 %v1905, 1.0
        %v2041 = vadd.f32 %v1907, 1.0
        %v2042 = vadd.f32 %v1909, 1.0
        %v2043 = vadd.f32 %v1911, 1.0
        %v2044 = vadd.f32 %v1913, 1.0
        %v2045 = vadd.f32 %v1915, 1.0
        %v2046 = vadd.f32 %v1917, 1.0
        %v2047 = vadd.f32 %v1919, 1.0
        %v2048 = vadd.f32 %v1921, 1.0
        %v2049 = vadd.f32 %v1923, 1.0
        %v2050 = vadd.f32 %v1925, 1.0
        %v2051 = vadd.f32 %v1927, 1.0
        %v2052 = vadd.f32 %v1929, 1.0
        %v2053 = vadd.f32 %v1931, 1.0
        %v2054 = vadd.f32 %v1933, 1.0
        %v2055 = vadd.f32 %v1935, 1.0
        %v2056 = vadd.f32 %v1937, 1.0
        %v2057 = vadd.f32 %v1939, 1.0
        %v2058 = vadd.f32 %v1941, 1.0
        %v2059 = vadd.f32 %v1943, 1.0
        %v2060 = vadd.f32 %v1945, 1.0
        %v2061 = vadd.f32 %v1947, 1.0
        %v2062 = vadd.f32 %v1949, 1.0
        %v2063 = vadd.f32 %v1951, 1.0
        %v2064 = vadd.f32 %v1953, 1.0
        %v2065 = vadd.f32 %v1955, 1.0
        %v2066 = vadd.f32 %v1957, 1.0
        %v2067 = vadd.f32 %v1959, 1.0
        %v2068 = vadd.f32 %v1961, 1.0
        %v2069 = vadd.f32 %v1963, 1.0
        %v2070 = vadd.f32 %v1965, 1.0
        %v2071 = vadd.f32 %v1967, 1.0
        %v2072 = vadd.f32 %v1969, 1.0
        %v2073 = vadd.f32 %v1971, 1.0
        %v2074 = vadd.f32 %v1973, 1.0
        %v2075 = vadd.f32 %v1975, 1.0
        %v2076 = vadd.f32 %v1977, 1.0
        %v2077 = vadd.f32 %v1979, 1.0
        %v2078 = vadd.f32 %v1981, 1.0
        %v2079 = vadd.f32 %v1983, 1.0
        %v2080 = vrcp.pop %v1984
        %v2081 = vmul.f32 1.0, %v2080
        %v2082 = vrcp.pop %v1985
        %v2083 = vmul.f32 1.0, %v2082
        %v2084 = vrcp.pop %v1986
        %v2085 = vmul.f32 1.0, %v2084
        %v2086 = vrcp.pop %v1987
        %v2087 = vmul.f32 1.0, %v2086
        %v2088 = vrcp.pop %v1988
        %v2089 = vmul.f32 1.0, %v2088
        %v2090 = vrcp.pop %v1989
        %v2091 = vmul.f32 1.0, %v2090
        %v2092 = vrcp.pop %v1990
        %v2093 = vmul.f32 1.0, %v2092
        %v2094 = vrcp.pop %v1991
        %v2095 = vmul.f32 1.0, %v2094
        %v2096 = vrcp.pop %v1992
        %v2097 = vmul.f32 1.0, %v2096
        %v2098 = vrcp.pop %v1993
        %v2099 = vmul.f32 1.0, %v2098
        %v2100 = vrcp.pop %v1994
        %v2101 = vmul.f32 1.0, %v2100
        %v2102 = vrcp.pop %v1995
        %v2103 = vmul.f32 1.0, %v2102
        %v2104 = vrcp.pop %v1996
        %v2105 = vmul.f32 1.0, %v2104
        %v2106 = vrcp.pop %v1997
        %v2107 = vmul.f32 1.0, %v2106
        %v2108 = vrcp.pop %v1998
        %v2109 = vmul.f32 1.0, %v2108
        %v2110 = vrcp.pop %v1999
        %v2111 = vmul.f32 1.0, %v2110
        %v2112 = vrcp.pop %v2000
        %v2113 = vmul.f32 1.0, %v2112
        %v2114 = vrcp.pop %v2001
        %v2115 = vmul.f32 1.0, %v2114
        %v2116 = vrcp.pop %v2002
        %v2117 = vmul.f32 1.0, %v2116
        %v2118 = vrcp.pop %v2003
        %v2119 = vmul.f32 1.0, %v2118
        %v2120 = vrcp.pop %v2004
        %v2121 = vmul.f32 1.0, %v2120
        %v2122 = vrcp.pop %v2005
        %v2123 = vmul.f32 1.0, %v2122
        %v2124 = vrcp.pop %v2006
        %v2125 = vmul.f32 1.0, %v2124
        %v2126 = vrcp.pop %v2007
        %v2127 = vmul.f32 1.0, %v2126
        %v2128 = vrcp.pop %v2008
        %v2129 = vmul.f32 1.0, %v2128
        %v2130 = vrcp.pop %v2009
        %v2131 = vmul.f32 1.0, %v2130
        %v2132 = vrcp.pop %v2010
        %v2133 = vmul.f32 1.0, %v2132
        %v2134 = vrcp.pop %v2011
        %v2135 = vmul.f32 1.0, %v2134
        %v2136 = vrcp.pop %v2012
        %v2137 = vmul.f32 1.0, %v2136
        %v2138 = vrcp.pop %v2013
        %v2139 = vmul.f32 1.0, %v2138
        %v2140 = vrcp.pop %v2014
        %v2141 = vmul.f32 1.0, %v2140
        %v2142 = vrcp.pop %v2015
        %v2143 = vmul.f32 1.0, %v2142
        %v2144 = vrcp.pop %v2016
        %v2145 = vmul.f32 1.0, %v2144
        %v2146 = vrcp.pop %v2017
        %v2147 = vmul.f32 1.0, %v2146
        %v2148 = vrcp.pop %v2018
        %v2149 = vmul.f32 1.0, %v2148
        %v2150 = vrcp.pop %v2019
        %v2151 = vmul.f32 1.0, %v2150
        %v2152 = vrcp.pop %v2020
        %v2153 = vmul.f32 1.0, %v2152
        %v2154 = vrcp.pop %v2021
        %v2155 = vmul.f32 1.0, %v2154
        %v2156 = vrcp.pop %v2022
        %v2157 = vmul.f32 1.0, %v2156
        %v2158 = vrcp.pop %v2023
        %v2159 = vmul.f32 1.0, %v2158
        %v2160 = vrcp.pop %v2024
        %v2161 = vmul.f32 1.0, %v2160
        %v2162 = vrcp.pop %v2025
        %v2163 = vmul.f32 1.0, %v2162
        %v2164 = vrcp.pop %v2026
        %v2165 = vmul.f32 1.0, %v2164
        %v2166 = vrcp.pop %v2027
        %v2167 = vmul.f32 1.0, %v2166
        %v2168 = vrcp.pop %v2028
        %v2169 = vmul.f32 1.0, %v2168
        %v2170 = vrcp.pop %v2029
        %v2171 = vmul.f32 1.0, %v2170
        %v2172 = vrcp.pop %v2030
        %v2173 = vmul.f32 1.0, %v2172
        %v2174 = vrcp.pop %v2031
        %v2175 = vmul.f32 1.0, %v2174
        %v2176 = vrcp.pop %v2032
        %v2177 = vmul.f32 1.0, %v2176
        %v2178 = vrcp.pop %v2033
        %v2179 = vmul.f32 1.0, %v2178
        %v2180 = vrcp.pop %v2034
        %v2181 = vmul.f32 1.0, %v2180
        %v2182 = vrcp.pop %v2035
        %v2183 = vmul.f32 1.0, %v2182
        %v2184 = vrcp.pop %v2036
        %v2185 = vmul.f32 1.0, %v2184
        %v2186 = vrcp.pop %v2037
        %v2187 = vmul.f32 1.0, %v2186
        %v2188 = vrcp.pop %v2038
        %v2189 = vmul.f32 1.0, %v2188
        %v2190 = vrcp.pop %v2039
        %v2191 = vmul.f32 1.0, %v2190
        %v2192 = vrcp.pop %v2040
        %v2193 = vmul.f32 1.0, %v2192
        %v2194 = vrcp.pop %v2041
        %v2195 = vmul.f32 1.0, %v2194
        %v2196 = vrcp.pop %v2042
        %v2197 = vmul.f32 1.0, %v2196
        %v2198 = vrcp.pop %v2043
        %v2199 = vmul.f32 1.0, %v2198
        %v2200 = vrcp.pop %v2044
        %v2201 = vmul.f32 1.0, %v2200
        %v2202 = vrcp.pop %v2045
        %v2203 = vmul.f32 1.0, %v2202
        %v2204 = vrcp.pop %v2046
        %v2205 = vmul.f32 1.0, %v2204
        %v2206 = vrcp.pop %v2047
        %v2207 = vmul.f32 1.0, %v2206
        %v2208 = vrcp.pop %v2048
        %v2209 = vmul.f32 1.0, %v2208
        %v2210 = vrcp.pop %v2049
        %v2211 = vmul.f32 1.0, %v2210
        %v2212 = vrcp.pop %v2050
        %v2213 = vmul.f32 1.0, %v2212
        %v2214 = vrcp.pop %v2051
        %v2215 = vmul.f32 1.0, %v2214
        %v2216 = vrcp.pop %v2052
        %v2217 = vmul.f32 1.0, %v2216
        %v2218 = vrcp.pop %v2053
        %v2219 = vmul.f32 1.0, %v2218
        %v2220 = vrcp.pop %v2054
        %v2221 = vmul.f32 1.0, %v2220
        %v2222 = vrcp.pop %v2055
        %v2223 = vmul.f32 1.0, %v2222
        %v2224 = vrcp.pop %v2056
        %v2225 = vmul.f32 1.0, %v2224
        %v2226 = vrcp.pop %v2057
        %v2227 = vmul.f32 1.0, %v2226
        %v2228 = vrcp.pop %v2058
        %v2229 = vmul.f32 1.0, %v2228
        %v2230 = vrcp.pop %v2059
        %v2231 = vmul.f32 1.0, %v2230
        %v2232 = vrcp.pop %v2060
        %v2233 = vmul.f32 1.0, %v2232
        %v2234 = vrcp.pop %v2061
        %v2235 = vmul.f32 1.0, %v2234
        %v2236 = vrcp.pop %v2062
        %v2237 = vmul.f32 1.0, %v2236
        %v2238 = vrcp.pop %v2063
        %v2239 = vmul.f32 1.0, %v2238
        %v2240 = vrcp.pop %v2064
        %v2241 = vmul.f32 1.0, %v2240
        %v2242 = vrcp.pop %v2065
        %v2243 = vmul.f32 1.0, %v2242
        %v2244 = vrcp.pop %v2066
        %v2245 = vmul.f32 1.0, %v2244
        %v2246 = vrcp.pop %v2067
        %v2247 = vmul.f32 1.0, %v2246
        %v2248 = vrcp.pop %v2068
        %v2249 = vmul.f32 1.0, %v2248
        %v2250 = vrcp.pop %v2069
        %v2251 = vmul.f32 1.0, %v2250
        %v2252 = vrcp.pop %v2070
        %v2253 = vmul.f32 1.0, %v2252
        %v2254 = vrcp.pop %v2071
        %v2255 = vmul.f32 1.0, %v2254
        %v2256 = vrcp.pop %v2072
        %v2257 = vmul.f32 1.0, %v2256
        %v2258 = vrcp.pop %v2073
        %v2259 = vmul.f32 1.0, %v2258
        %v2260 = vrcp.pop %v2074
        %v2261 = vmul.f32 1.0, %v2260
        %v2262 = vrcp.pop %v2075
        %v2263 = vmul.f32 1.0, %v2262
        %v2264 = vrcp.pop %v2076
        %v2265 = vmul.f32 1.0, %v2264
        %v2266 = vrcp.pop %v2077
        %v2267 = vmul.f32 1.0, %v2266
        %v2268 = vrcp.pop %v2078
        %v2269 = vmul.f32 1.0, %v2268
        %v2270 = vrcp.pop %v2079
        %v2271 = vmul.f32 1.0, %v2270
        %2272 = vst [vmem:[%s272] sm:$0xff] %v2081
        %2273 = vst [vmem:[%s272 + $0x8] sm:$0xff] %v2083
        %2274 = vst [vmem:[%s272 + $0x10] sm:$0xff] %v2085
        %2275 = vst [vmem:[%s272 + $0x18] sm:$0xff] %v2087
        %2276 = vst [vmem:[%s272 + $0x20] sm:$0xff] %v2089
        %2277 = vst [vmem:[%s272 + $0x28] sm:$0xff] %v2091
        %2278 = vst [vmem:[%s272 + $0x30] sm:$0xff] %v2093
        %2279 = vst [vmem:[%s272 + $0x38] sm:$0xff] %v2095
        %2280 = vst [vmem:[%s272 + $0x40] sm:$0xff] %v2097
        %2281 = vst [vmem:[%s272 + $0x48] sm:$0xff] %v2099
        %2282 = vst [vmem:[%s272 + $0x50] sm:$0xff] %v2101
        %2283 = vst [vmem:[%s272 + $0x58] sm:$0xff] %v2103
        %2284 = vst [vmem:[%s272 + $0x60] sm:$0xff] %v2105
        %2285 = vst [vmem:[%s272 + $0x68] sm:$0xff] %v2107
        %2286 = vst [vmem:[%s272 + $0x70] sm:$0xff] %v2109
        %2287 = vst [vmem:[%s272 + $0x78] sm:$0xff] %v2111
        %2288 = vst [vmem:[%s272 + $0x80] sm:$0xff] %v2113
        %2289 = vst [vmem:[%s272 + $0x88] sm:$0xff] %v2115
        %2290 = vst [vmem:[%s272 + $0x90] sm:$0xff] %v2117
        %2291 = vst [vmem:[%s272 + $0x98] sm:$0xff] %v2119
        %2292 = vst [vmem:[%s272 + $0xa0] sm:$0xff] %v2121
        %2293 = vst [vmem:[%s272 + $0xa8] sm:$0xff] %v2123
        %2294 = vst [vmem:[%s272 + $0xb0] sm:$0xff] %v2125
        %2295 = vst [vmem:[%s272 + $0xb8] sm:$0xff] %v2127
        %2296 = vst [vmem:[%s272 + $0xc0] sm:$0xff] %v2129
        %2297 = vst [vmem:[%s272 + $0xc8] sm:$0xff] %v2131
        %2298 = vst [vmem:[%s272 + $0xd0] sm:$0xff] %v2133
        %2299 = vst [vmem:[%s272 + $0xd8] sm:$0xff] %v2135
        %2300 = vst [vmem:[%s272 + $0xe0] sm:$0xff] %v2137
        %2301 = vst [vmem:[%s272 + $0xe8] sm:$0xff] %v2139
        %2302 = vst [vmem:[%s272 + $0xf0] sm:$0xff] %v2141
        %2303 = vst [vmem:[%s272 + $0xf8] sm:$0xff] %v2143
        %2304 = vst [vmem:[%s272 + $0x100] sm:$0xff] %v2145
        %2305 = vst [vmem:[%s272 + $0x108] sm:$0xff] %v2147
        %2306 = vst [vmem:[%s272 + $0x110] sm:$0xff] %v2149
        %2307 = vst [vmem:[%s272 + $0x118] sm:$0xff] %v2151
        %2308 = vst [vmem:[%s272 + $0x120] sm:$0xff] %v2153
        %2309 = vst [vmem:[%s272 + $0x128] sm:$0xff] %v2155
        %2310 = vst [vmem:[%s272 + $0x130] sm:$0xff] %v2157
        %2311 = vst [vmem:[%s272 + $0x138] sm:$0xff] %v2159
        %2312 = vst [vmem:[%s272 + $0x140] sm:$0xff] %v2161
        %2313 = vst [vmem:[%s272 + $0x148] sm:$0xff] %v2163
        %2314 = vst [vmem:[%s272 + $0x150] sm:$0xff] %v2165
        %2315 = vst [vmem:[%s272 + $0x158] sm:$0xff] %v2167
        %2316 = vst [vmem:[%s272 + $0x160] sm:$0xff] %v2169
        %2317 = vst [vmem:[%s272 + $0x168] sm:$0xff] %v2171
        %2318 = vst [vmem:[%s272 + $0x170] sm:$0xff] %v2173
        %2319 = vst [vmem:[%s272 + $0x178] sm:$0xff] %v2175
        %2320 = vst [vmem:[%s272 + $0x180] sm:$0xff] %v2177
        %2321 = vst [vmem:[%s272 + $0x188] sm:$0xff] %v2179
        %2322 = vst [vmem:[%s272 + $0x190] sm:$0xff] %v2181
        %2323 = vst [vmem:[%s272 + $0x198] sm:$0xff] %v2183
        %2324 = vst [vmem:[%s272 + $0x1a0] sm:$0xff] %v2185
        %2325 = vst [vmem:[%s272 + $0x1a8] sm:$0xff] %v2187
        %2326 = vst [vmem:[%s272 + $0x1b0] sm:$0xff] %v2189
        %2327 = vst [vmem:[%s272 + $0x1b8] sm:$0xff] %v2191
        %2328 = vst [vmem:[%s272 + $0x1c0] sm:$0xff] %v2193
        %2329 = vst [vmem:[%s272 + $0x1c8] sm:$0xff] %v2195
        %2330 = vst [vmem:[%s272 + $0x1d0] sm:$0xff] %v2197
        %2331 = vst [vmem:[%s272 + $0x1d8] sm:$0xff] %v2199
        %2332 = vst [vmem:[%s272 + $0x1e0] sm:$0xff] %v2201
        %2333 = vst [vmem:[%s272 + $0x1e8] sm:$0xff] %v2203
        %2334 = vst [vmem:[%s272 + $0x1f0] sm:$0xff] %v2205
        %2335 = vst [vmem:[%s272 + $0x1f8] sm:$0xff] %v2207
        %2336 = vst [vmem:[%s272 + $0x200] sm:$0xff] %v2209
        %2337 = vst [vmem:[%s272 + $0x208] sm:$0xff] %v2211
        %2338 = vst [vmem:[%s272 + $0x210] sm:$0xff] %v2213
        %2339 = vst [vmem:[%s272 + $0x218] sm:$0xff] %v2215
        %2340 = vst [vmem:[%s272 + $0x220] sm:$0xff] %v2217
        %2341 = vst [vmem:[%s272 + $0x228] sm:$0xff] %v2219
        %2342 = vst [vmem:[%s272 + $0x230] sm:$0xff] %v2221
        %2343 = vst [vmem:[%s272 + $0x238] sm:$0xff] %v2223
        %2344 = vst [vmem:[%s272 + $0x240] sm:$0xff] %v2225
        %2345 = vst [vmem:[%s272 + $0x248] sm:$0xff] %v2227
        %2346 = vst [vmem:[%s272 + $0x250] sm:$0xff] %v2229
        %2347 = vst [vmem:[%s272 + $0x258] sm:$0xff] %v2231
        %2348 = vst [vmem:[%s272 + $0x260] sm:$0xff] %v2233
        %2349 = vst [vmem:[%s272 + $0x268] sm:$0xff] %v2235
        %2350 = vst [vmem:[%s272 + $0x270] sm:$0xff] %v2237
        %2351 = vst [vmem:[%s272 + $0x278] sm:$0xff] %v2239
        %2352 = vst [vmem:[%s272 + $0x280] sm:$0xff] %v2241
        %2353 = vst [vmem:[%s272 + $0x288] sm:$0xff] %v2243
        %2354 = vst [vmem:[%s272 + $0x290] sm:$0xff] %v2245
        %2355 = vst [vmem:[%s272 + $0x298] sm:$0xff] %v2247
        %2356 = vst [vmem:[%s272 + $0x2a0] sm:$0xff] %v2249
        %2357 = vst [vmem:[%s272 + $0x2a8] sm:$0xff] %v2251
        %2358 = vst [vmem:[%s272 + $0x2b0] sm:$0xff] %v2253
        %2359 = vst [vmem:[%s272 + $0x2b8] sm:$0xff] %v2255
        %2360 = vst [vmem:[%s272 + $0x2c0] sm:$0xff] %v2257
        %2361 = vst [vmem:[%s272 + $0x2c8] sm:$0xff] %v2259
        %2362 = vst [vmem:[%s272 + $0x2d0] sm:$0xff] %v2261
        %2363 = vst [vmem:[%s272 + $0x2d8] sm:$0xff] %v2263
        %2364 = vst [vmem:[%s272 + $0x2e0] sm:$0xff] %v2265
        %2365 = vst [vmem:[%s272 + $0x2e8] sm:$0xff] %v2267
        %2366 = vst [vmem:[%s272 + $0x2f0] sm:$0xff] %v2269
        %2367 = vst [vmem:[%s272 + $0x2f8] sm:$0xff] %v2271
        %s2368 = sand.u32 %s141, 1
        %s2369 = scalar_lea.sflag [#allocation4], %s2368
        %s2370 = sand.u32 %s141, 1
        %s2371 = smul.addr %s2370, 768
        %s2372 = scalar_lea.vmem [#allocation8], %s2371
        // Predicated region
        $region53: #{tpu_custom_call.1} parent=39 // pred_check
          %p2373 = pneg %p151
        $region54: #{tpu_custom_call.1} parent=39 // pred_check_branch
          %2375 = sbr.rel (%p2373) target = $region56
        $region55: #{tpu_custom_call.1} parent=39 // pred_region
          %s2376 = smul.u32 32, %s23
          %s2378 = ssub.s32 12288, 12288
          %2379 = vsyncadd %s2369, %s2378
          %s2380 = smul.addr %s2376, 3
          %s2381 = smul.addr %s2380, 128
          %s2382 = scalar_lea.hbm %s5, %s2381
          %s2383 = sshll.u32 %s2372, 4
          %s2384 = int_to_ptr.vmem [resolvable:$true] %s2383
          %2389 = dma.vmem_to_hbm [thread:$0]  %s2384, 12288, %s2382, %s2369, 384, 384, 24
        $region56: #{tpu_custom_call.1} parent=39 // pred_fallthru
          _
      $region40: #{tpu_custom_call.1} parent=5 // pred_fallthru
        _
      %p2390 = scmp.le.s32.totalorder 2, %s18
      // Predicated region
      $region57: #{tpu_custom_call.1} parent=5 // pred_check
        %p2391 = pneg %p2390
      $region58: #{tpu_custom_call.1} parent=5 // pred_check_branch
        %2393 = sbr.rel (%p2391) target = $region60
      $region59: #{tpu_custom_call.1} parent=5 // pred_region
        %s2394 = ssub.s32 %s18, 2
        // Predicated region
        $region61: #{tpu_custom_call.1} parent=59 // pred_check
          %p2395 = pneg %p157
        $region62: #{tpu_custom_call.1} parent=59 // pred_check_branch
          %2397 = sbr.rel (%p2395) target = $region64
        $region63: #{tpu_custom_call.1} parent=59 // pred_region
          %s2398 = sand.u32 %s142, 1
          %s2399 = scalar_lea.sflag [#allocation4], %s2398
          %s2400 = sand.u32 %s142, 1
          %s2401 = smul.addr %s2400, 768
          %s2402 = scalar_lea.vmem [#allocation8], %s2401
          %2403 = dma.done %s2399, 12288
        $region64: #{tpu_custom_call.1} parent=59 // pred_fallthru
          _
      $region60: #{tpu_custom_call.1} parent=5 // pred_fallthru
        _
    $region6: #{tpu_custom_call.1} parent=1 // loop_footer
      %s22 = sadd.s32 1, %s18
    $region7: #{tpu_custom_call.1} parent=1 // loop_footer_branch
      %17 = sbr.rel target = $region3
    $region8: #{tpu_custom_call.1} parent=1 // loop_exit
      _
    %2404 = vsyncpa [#allocation3], 1
    %s2405 = scalar_lea.sflag [#allocation3], 1
    %2406 = vsyncpa %s2405, 1
    %2407 = vsyncpa [#allocation6], 1
    %2408 = vsyncpa [#allocation4], 1
    %s2409 = scalar_lea.sflag [#allocation4], 1
    %2410 = vsyncpa %s2409, 1

</llo_original>
